<compile_context>
chip_gen: v7x
topology: tpu7x:2x2x1
jax: 0.10.0
libtpu: 0.0.40
codegen_flags: <defaults>
</compile_context>

<pallas_src>
import jax
import jax.numpy as jnp
from jax.experimental import pallas as pl
from jax.experimental.pallas import tpu as pltpu


def _round_up(x, m):
    return (x + m - 1) // m * m


def _pick_time_chunk(T, cap=16):
    """Largest divisor of T that is <= cap (chunked grid needs T % Tc == 0)."""
    tc = 1
    for d in range(1, min(T, cap) + 1):
        if T % d == 0:
            tc = d
    return tc


def _gru_kernel(x_ref, wih_ref, whh_ref, bsum_ref, out_ref, gi_ref, h_ref):
    """One time-chunk. x_ref is (Tc*Bp, D) bf16 (time-major, batch padded).
    gi_ref: (Tc*Bp, 3Hp) f32 scratch for this chunk's input projection.
    h_ref:  (Bp, Hp) f32 scratch carrying the hidden state across chunks.
    out_ref: (Bp, Hp) f32 final hidden state (written on the last chunk)."""
    Hp = whh_ref.shape[0]          # padded hidden (multiple of 128)
    Bp = out_ref.shape[0]          # padded batch  (multiple of 8)
    Tc = x_ref.shape[0] // Bp      # static timesteps per chunk
    chunk = pl.program_id(0)

    # Chunk-wide input projection: one MXU matmul, off the serial dependence
    # chain. b_ih is folded into b_sum (added with gh below), so there is no
    # extra VPU add pass over the slab.
    gi_ref[...] = jnp.dot(x_ref[...], wih_ref[...],
                          preferred_element_type=jnp.float32)

    @pl.when(chunk == 0)
    def _():
        h_ref[...] = jnp.zeros_like(h_ref)

    # Hoist loop-invariant loads / broadcasts out of the time loop.
    w_hh = whh_ref[...]
    b_sum = jnp.broadcast_to(bsum_ref[...], (Bp, 3 * Hp))

    def step(t, h):
        row = pl.multiple_of(t * Bp, Bp)
        gi = gi_ref[pl.ds(row, Bp), :]                         # (Bp, 3Hp) f32
        # TODO(synk): weight-stationary MXU (push W_hh once per chunk) — see
        # header note; keep jnp.dot until verified on hardware.
        gh = jnp.dot(h.astype(jnp.bfloat16), w_hh,
                     preferred_element_type=jnp.float32) + b_sum
        # PyTorch GRU gate layout [r | z | n]; slices are lane-aligned.
        rz = jax.nn.sigmoid(gi[:, :2 * Hp] + gh[:, :2 * Hp])   # r and z together
        r = rz[:, :Hp]
        z = rz[:, Hp:]
        n = jnp.tanh(gi[:, 2 * Hp:] + r * gh[:, 2 * Hp:])
        return n + z * (h - n)                                  # == (1-z)*n + z*h

    h_final = jax.lax.fori_loop(0, Tc, step, h_ref[...], unroll=True)
    h_ref[...] = h_final

    @pl.when(chunk == pl.num_programs(0) - 1)
    def _():
        out_ref[...] = h_final


def _pad_gate_cols(w, H, Hp):
    """(rows, 3H) -> (rows, 3Hp), each gate block placed at offset k*Hp."""
    rows = w.shape[0]
    out = jnp.zeros((rows, 3 * Hp), w.dtype)
    for k in range(3):
        out = out.at[:, k * Hp:k * Hp + H].set(w[:, k * H:(k + 1) * H])
    return out


def gru_forward(x, params):
    """x: (B, T, D) batch_first, like the PyTorch module. Returns (B, O)."""
    B, T, D = x.shape
    H = params["w_hh"].shape[0] // 3

    Hp = _round_up(H, 128)   # lane width
    Bp = _round_up(B, 8)     # sublanes
    Tc = _pick_time_chunk(T)
    nt = T // Tc

    # x -> time-major, batch padded, flattened to (T*Bp, D), bf16 for the MXU.
    x_tbd = jnp.transpose(x, (1, 0, 2)).astype(jnp.float32)       # (T, B, D)
    x_pad = jnp.zeros((T, Bp, D), jnp.float32).at[:, :B, :].set(x_tbd)
    x_flat = x_pad.reshape(T * Bp, D).astype(jnp.bfloat16)

    # Weights transposed for plain (row x col) matmuls; gate columns re-packed
    # onto Hp-aligned offsets; zero padding elsewhere.
    wih_t = _pad_gate_cols(params["w_ih"].T.astype(jnp.float32), H, Hp)
    wih_t = wih_t.astype(jnp.bfloat16)                            # (D, 3Hp)
    whh_rows = jnp.zeros((Hp, 3 * H), jnp.float32).at[:H, :].set(
        params["w_hh"].T.astype(jnp.float32))
    whh_t = _pad_gate_cols(whh_rows, H, Hp).astype(jnp.bfloat16)  # (Hp, 3Hp)
    b_sum = _pad_gate_cols(
        (params["b_ih"] + params["b_hh"]).reshape(1, 3 * H).astype(jnp.float32),
        H, Hp)                                                    # (1, 3Hp)

    grid_spec = pltpu.PrefetchScalarGridSpec(
        num_scalar_prefetch=0,
        grid=(nt,),  # time chunks; recurrence within a chunk is a fori_loop
        in_specs=[
            pl.BlockSpec((Tc * Bp, D), lambda t: (t, 0)),         # x chunk
            pl.BlockSpec((D, 3 * Hp), lambda t: (0, 0)),          # W_ih^T
            pl.BlockSpec((Hp, 3 * Hp), lambda t: (0, 0)),         # W_hh^T
            pl.BlockSpec((1, 3 * Hp), lambda t: (0, 0)),          # b_ih + b_hh
        ],
        out_specs=pl.BlockSpec((Bp, Hp), lambda t: (0, 0)),       # final h
        scratch_shapes=[
            pltpu.VMEM((Tc * Bp, 3 * Hp), jnp.float32),           # gi chunk slab
            pltpu.VMEM((Bp, Hp), jnp.float32),                    # carried h
        ],
    )

    # Explicit scoped-VMEM limit sized to the chunk working set (+ pipeline
    # double-buffers and headroom); capped below v7x physical VMEM.
    work_bytes = (
        2 * (Tc * Bp * D) * 2          # x chunk, double-buffered, bf16
        + (D * 3 * Hp) * 2             # W_ih^T (bf16)
        + (Hp * 3 * Hp) * 2            # W_hh^T (bf16)
        + (3 * Hp) * 4                 # b_sum (f32)
        + (Tc * Bp * 3 * Hp) * 4       # gi scratch slab (f32)
        + 2 * (Bp * Hp) * 4            # h scratch + output block (f32)
    )
    vmem_limit = int(min(max(2 * work_bytes + (4 << 20), 32 << 20), 64 << 20))

    h_final = pl.pallas_call(
        _gru_kernel,
        out_shape=jax.ShapeDtypeStruct((Bp, Hp), jnp.float32),
        grid_spec=grid_spec,
        compiler_params=pltpu.CompilerParams(
            dimension_semantics=("arbitrary",),
            vmem_limit_bytes=vmem_limit),
    )(x_flat, wih_t, whh_t, b_sum)

    # FC head (O=1) in plain XLA on the un-padded final hidden state; keeping
    # it out of the kernel avoids a lane-width-1 masked store.
    h = h_final[:B, :H]
    return h @ params["w_fc"].T.astype(jnp.float32) + params["b_fc"].astype(jnp.float32)


gru_forward_jit = jax.jit(gru_forward)


def init_params(key, input_size, hidden_size, output_size):
    """nn.GRU / nn.Linear parameter shapes (num_layers=1), PyTorch-style init."""
    H = hidden_size
    ks = jax.random.split(key, 6)
    s = 1.0 / jnp.sqrt(H)
    return {
        "w_ih": jax.random.uniform(ks[0], (3 * H, input_size), jnp.float32, -s, s),
        "w_hh": jax.random.uniform(ks[1], (3 * H, H), jnp.float32, -s, s),
        "b_ih": jax.random.uniform(ks[2], (3 * H,), jnp.float32, -s, s),
        "b_hh": jax.random.uniform(ks[3], (3 * H,), jnp.float32, -s, s),
        "w_fc": jax.random.uniform(ks[4], (output_size, H), jnp.float32, -s, s),
        "b_fc": jax.random.uniform(ks[5], (output_size,), jnp.float32, -s, s),
    }


def gru_forward_ref(x, params):
    """Pure-JAX f32 reference of the same PyTorch GRU+Linear forward."""
    H = params["w_hh"].shape[0] // 3
    B, T, D = x.shape
    h = jnp.zeros((B, H), jnp.float32)
    wih_t = params["w_ih"].T
    whh_t = params["w_hh"].T
    for t in range(T):
        gi = x[:, t, :] @ wih_t + params["b_ih"]
        gh = h @ whh_t + params["b_hh"]
        r = jax.nn.sigmoid(gi[:, :H] + gh[:, :H])
        z = jax.nn.sigmoid(gi[:, H:2 * H] + gh[:, H:2 * H])
        n = jnp.tanh(gi[:, 2 * H:] + r * gh[:, 2 * H:])
        h = (1.0 - z) * n + z * h
    return h @ params["w_fc"].T + params["b_fc"]


if __name__ == "__main__":
    B, T, D = 4, 8, 16          # batch, seq, input_size
    H, O = 32, 1                # hidden_size, output_size

    key = jax.random.PRNGKey(0)
    kx, kp = jax.random.split(key)
    x = jax.random.normal(kx, (B, T, D), jnp.float32)
    params = init_params(kp, D, H, O)

    out = jax.block_until_ready(gru_forward_jit(x, params))
    ref = gru_forward_ref(x, params)

    assert out.shape == (B, O)
    # bf16 MXU operands -> loosened tolerance vs the f32 reference.
    assert jnp.allclose(out, ref, atol=5e-2, rtol=5e-2), (out, ref)

    print("KERNEL_OK")
</pallas_src>

<mosaic_0001>
module attributes {stable_mosaic.version = 11 : i64} {
  func.func @_gru_kernel(%arg0: i32, %arg1: memref<64x16xbf16, #tpu.memory_space<vmem>>, %arg2: memref<16x384xbf16, #tpu.memory_space<vmem>>, %arg3: memref<128x384xbf16, #tpu.memory_space<vmem>>, %arg4: memref<1x384xf32, #tpu.memory_space<vmem>>, %arg5: memref<8x128xf32, #tpu.memory_space<vmem>>, %arg6: memref<64x384xf32, #tpu.memory_space<vmem>>, %arg7: memref<8x128xf32, #tpu.memory_space<vmem>>) attributes {dimension_semantics = [#tpu.dimension_semantics<arbitrary>], iteration_bounds = array<i64: 1>, scalar_prefetch = 0 : i64, scratch_operands = 2 : i64, tpu.core_type = #tpu.core_type<tc>, window_params = [{transform_indices = @transform_0, window_bounds = array<i64: 64, 16>}, {pipeline_mode = #tpu.pipeline_mode<synchronous>, transform_indices = @transform_1, window_bounds = array<i64: 16, 384>}, {pipeline_mode = #tpu.pipeline_mode<synchronous>, transform_indices = @transform_2, window_bounds = array<i64: 128, 384>}, {pipeline_mode = #tpu.pipeline_mode<synchronous>, transform_indices = @transform_3, window_bounds = array<i64: 1, 384>}, {pipeline_mode = #tpu.pipeline_mode<synchronous>, transform_indices = @transform_4, window_bounds = array<i64: 8, 128>}]} {
    %c0 = arith.constant 0 : index
    %c0_0 = arith.constant 0 : index
    %0 = vector.load %arg1[%c0, %c0_0] : memref<64x16xbf16, #tpu.memory_space<vmem>>, vector<64x16xbf16>
    %c0_1 = arith.constant 0 : index
    %c0_2 = arith.constant 0 : index
    %1 = vector.load %arg2[%c0_1, %c0_2] : memref<16x384xbf16, #tpu.memory_space<vmem>>, vector<16x384xbf16>
    %cst = arith.constant dense<0.000000e+00> : vector<64x384xf32>
    %2 = tpu.matmul %0, %1, %cst {dimension_numbers = #tpu.dot_dimension_numbers<[1], [0], [0], [1], [0, 0, 1, 1], [], []>} : vector<64x16xbf16>, vector<16x384xbf16>, vector<64x384xf32> -> vector<64x384xf32>
    %c0_3 = arith.constant 0 : index
    %c0_4 = arith.constant 0 : index
    %3 = vector.load %arg6[%c0_3, %c0_4] : memref<64x384xf32, #tpu.memory_space<vmem>>, vector<64x384xf32>
    tpu.vector_store %arg6[%c0_3, %c0_4], %2 {strides = array<i32>} : memref<64x384xf32, #tpu.memory_space<vmem>>, vector<64x384xf32>,
    %c0_i32 = arith.constant 0 : i32
    %4 = arith.cmpi eq, %arg0, %c0_i32 : i32
    %5 = arith.extui %4 : i1 to i32
    %c0_i32_5 = arith.constant 0 : i32
    %6 = arith.cmpi ne, %5, %c0_i32_5 : i32
    scf.if %6 {
      %cst_49 = arith.constant 0.000000e+00 : f32
      %216 = vector.broadcast %cst_49 : f32 to vector<8x128xf32>
      %c0_50 = arith.constant 0 : index
      %c0_51 = arith.constant 0 : index
      %217 = vector.load %arg7[%c0_50, %c0_51] : memref<8x128xf32, #tpu.memory_space<vmem>>, vector<8x128xf32>
      tpu.vector_store %arg7[%c0_50, %c0_51], %216 {strides = array<i32>} : memref<8x128xf32, #tpu.memory_space<vmem>>, vector<8x128xf32>,
    } else {
    }
    %c0_6 = arith.constant 0 : index
    %c0_7 = arith.constant 0 : index
    %7 = vector.load %arg3[%c0_6, %c0_7] : memref<128x384xbf16, #tpu.memory_space<vmem>>, vector<128x384xbf16>
    %c0_8 = arith.constant 0 : index
    %c0_9 = arith.constant 0 : index
    %8 = vector.load %arg4[%c0_8, %c0_9] : memref<1x384xf32, #tpu.memory_space<vmem>>, vector<1x384xf32>
    %9 = vector.shape_cast %8 : vector<1x384xf32> to vector<1x384xf32>
    %10 = vector.broadcast %9 : vector<1x384xf32> to vector<8x384xf32>
    %c0_10 = arith.constant 0 : index
    %c0_11 = arith.constant 0 : index
    %11 = vector.load %arg7[%c0_10, %c0_11] : memref<8x128xf32, #tpu.memory_space<vmem>>, vector<8x128xf32>
    %c0_i32_12 = arith.constant 0 : i32
    %c8_i32 = arith.constant 8 : i32
    %12 = arith.muli %c0_i32_12, %c8_i32 : i32
    %13 = tpu.assume_multiple %12, 8 : i32
    %14 = arith.index_cast %13 : i32 to index
    %c0_13 = arith.constant 0 : index
    %15 = vector.load %arg6[%14, %c0_13] : memref<64x384xf32, #tpu.memory_space<vmem>>, vector<8x384xf32>
    %16 = arith.truncf %11 : vector<8x128xf32> to vector<8x128xbf16>
    %cst_14 = arith.constant dense<0.000000e+00> : vector<8x384xf32>
    %17 = tpu.matmul %16, %7, %cst_14 {dimension_numbers = #tpu.dot_dimension_numbers<[1], [0], [0], [1], [0, 0, 1, 1], [], []>} : vector<8x128xbf16>, vector<128x384xbf16>, vector<8x384xf32> -> vector<8x384xf32>
    %18 = arith.addf %17, %10 : vector<8x384xf32>
    %19 = vector.extract_strided_slice %15 {offsets = [0, 0], sizes = [8, 256], strides = [1, 1]} : vector<8x384xf32> to vector<8x256xf32>
    %20 = vector.extract_strided_slice %18 {offsets = [0, 0], sizes = [8, 256], strides = [1, 1]} : vector<8x384xf32> to vector<8x256xf32>
    %21 = arith.addf %19, %20 : vector<8x256xf32>
    %22 = arith.negf %21 : vector<8x256xf32>
    %23 = math.exp %22 : vector<8x256xf32>
    %cst_15 = arith.constant 1.000000e+00 : f32
    %24 = vector.broadcast %cst_15 : f32 to vector<8x256xf32>
    %25 = arith.addf %24, %23 : vector<8x256xf32>
    %26 = arith.divf %24, %25 : vector<8x256xf32>
    %27 = vector.extract_strided_slice %26 {offsets = [0, 0], sizes = [8, 128], strides = [1, 1]} : vector<8x256xf32> to vector<8x128xf32>
    %28 = vector.extract_strided_slice %26 {offsets = [0, 128], sizes = [8, 128], strides = [1, 1]} : vector<8x256xf32> to vector<8x128xf32>
    %29 = vector.extract_strided_slice %15 {offsets = [0, 256], sizes = [8, 128], strides = [1, 1]} : vector<8x384xf32> to vector<8x128xf32>
    %30 = vector.extract_strided_slice %18 {offsets = [0, 256], sizes = [8, 128], strides = [1, 1]} : vector<8x384xf32> to vector<8x128xf32>
    %31 = arith.mulf %27, %30 : vector<8x128xf32>
    %32 = arith.addf %29, %31 : vector<8x128xf32>
    %33 = math.tanh %32 : vector<8x128xf32>
    %34 = arith.subf %11, %33 : vector<8x128xf32>
    %35 = arith.mulf %28, %34 : vector<8x128xf32>
    %36 = arith.addf %33, %35 : vector<8x128xf32>
    %c1_i32 = arith.constant 1 : i32
    %c8_i32_16 = arith.constant 8 : i32
    %37 = arith.muli %c1_i32, %c8_i32_16 : i32
    %38 = tpu.assume_multiple %37, 8 : i32
    %39 = arith.index_cast %38 : i32 to index
    %c0_17 = arith.constant 0 : index
    %40 = vector.load %arg6[%39, %c0_17] : memref<64x384xf32, #tpu.memory_space<vmem>>, vector<8x384xf32>
    %41 = arith.truncf %36 : vector<8x128xf32> to vector<8x128xbf16>
    %cst_18 = arith.constant dense<0.000000e+00> : vector<8x384xf32>
    %42 = tpu.matmul %41, %7, %cst_18 {dimension_numbers = #tpu.dot_dimension_numbers<[1], [0], [0], [1], [0, 0, 1, 1], [], []>} : vector<8x128xbf16>, vector<128x384xbf16>, vector<8x384xf32> -> vector<8x384xf32>
    %43 = arith.addf %42, %10 : vector<8x384xf32>
    %44 = vector.extract_strided_slice %40 {offsets = [0, 0], sizes = [8, 256], strides = [1, 1]} : vector<8x384xf32> to vector<8x256xf32>
    %45 = vector.extract_strided_slice %43 {offsets = [0, 0], sizes = [8, 256], strides = [1, 1]} : vector<8x384xf32> to vector<8x256xf32>
    %46 = arith.addf %44, %45 : vector<8x256xf32>
    %47 = arith.negf %46 : vector<8x256xf32>
    %48 = math.exp %47 : vector<8x256xf32>
    %cst_19 = arith.constant 1.000000e+00 : f32
    %49 = vector.broadcast %cst_19 : f32 to vector<8x256xf32>
    %50 = arith.addf %49, %48 : vector<8x256xf32>
    %51 = arith.divf %49, %50 : vector<8x256xf32>
    %52 = vector.extract_strided_slice %51 {offsets = [0, 0], sizes = [8, 128], strides = [1, 1]} : vector<8x256xf32> to vector<8x128xf32>
    %53 = vector.extract_strided_slice %51 {offsets = [0, 128], sizes = [8, 128], strides = [1, 1]} : vector<8x256xf32> to vector<8x128xf32>
    %54 = vector.extract_strided_slice %40 {offsets = [0, 256], sizes = [8, 128], strides = [1, 1]} : vector<8x384xf32> to vector<8x128xf32>
    %55 = vector.extract_strided_slice %43 {offsets = [0, 256], sizes = [8, 128], strides = [1, 1]} : vector<8x384xf32> to vector<8x128xf32>
    %56 = arith.mulf %52, %55 : vector<8x128xf32>
    %57 = arith.addf %54, %56 : vector<8x128xf32>
    %58 = math.tanh %57 : vector<8x128xf32>
    %59 = arith.subf %36, %58 : vector<8x128xf32>
    %60 = arith.mulf %53, %59 : vector<8x128xf32>
    %61 = arith.addf %58, %60 : vector<8x128xf32>
    %c2_i32 = arith.constant 2 : i32
    %c8_i32_20 = arith.constant 8 : i32
    %62 = arith.muli %c2_i32, %c8_i32_20 : i32
    %63 = tpu.assume_multiple %62, 8 : i32
    %64 = arith.index_cast %63 : i32 to index
    %c0_21 = arith.constant 0 : index
    %65 = vector.load %arg6[%64, %c0_21] : memref<64x384xf32, #tpu.memory_space<vmem>>, vector<8x384xf32>
    %66 = arith.truncf %61 : vector<8x128xf32> to vector<8x128xbf16>
    %cst_22 = arith.constant dense<0.000000e+00> : vector<8x384xf32>
    %67 = tpu.matmul %66, %7, %cst_22 {dimension_numbers = #tpu.dot_dimension_numbers<[1], [0], [0], [1], [0, 0, 1, 1], [], []>} : vector<8x128xbf16>, vector<128x384xbf16>, vector<8x384xf32> -> vector<8x384xf32>
    %68 = arith.addf %67, %10 : vector<8x384xf32>
    %69 = vector.extract_strided_slice %65 {offsets = [0, 0], sizes = [8, 256], strides = [1, 1]} : vector<8x384xf32> to vector<8x256xf32>
    %70 = vector.extract_strided_slice %68 {offsets = [0, 0], sizes = [8, 256], strides = [1, 1]} : vector<8x384xf32> to vector<8x256xf32>
    %71 = arith.addf %69, %70 : vector<8x256xf32>
    %72 = arith.negf %71 : vector<8x256xf32>
    %73 = math.exp %72 : vector<8x256xf32>
    %cst_23 = arith.constant 1.000000e+00 : f32
    %74 = vector.broadcast %cst_23 : f32 to vector<8x256xf32>
    %75 = arith.addf %74, %73 : vector<8x256xf32>
    %76 = arith.divf %74, %75 : vector<8x256xf32>
    %77 = vector.extract_strided_slice %76 {offsets = [0, 0], sizes = [8, 128], strides = [1, 1]} : vector<8x256xf32> to vector<8x128xf32>
    %78 = vector.extract_strided_slice %76 {offsets = [0, 128], sizes = [8, 128], strides = [1, 1]} : vector<8x256xf32> to vector<8x128xf32>
    %79 = vector.extract_strided_slice %65 {offsets = [0, 256], sizes = [8, 128], strides = [1, 1]} : vector<8x384xf32> to vector<8x128xf32>
    %80 = vector.extract_strided_slice %68 {offsets = [0, 256], sizes = [8, 128], strides = [1, 1]} : vector<8x384xf32> to vector<8x128xf32>
    %81 = arith.mulf %77, %80 : vector<8x128xf32>
    %82 = arith.addf %79, %81 : vector<8x128xf32>
    %83 = math.tanh %82 : vector<8x128xf32>
    %84 = arith.subf %61, %83 : vector<8x128xf32>
    %85 = arith.mulf %78, %84 : vector<8x128xf32>
    %86 = arith.addf %83, %85 : vector<8x128xf32>
    %c3_i32 = arith.constant 3 : i32
    %c8_i32_24 = arith.constant 8 : i32
    %87 = arith.muli %c3_i32, %c8_i32_24 : i32
    %88 = tpu.assume_multiple %87, 8 : i32
    %89 = arith.index_cast %88 : i32 to index
    %c0_25 = arith.constant 0 : index
    %90 = vector.load %arg6[%89, %c0_25] : memref<64x384xf32, #tpu.memory_space<vmem>>, vector<8x384xf32>
    %91 = arith.truncf %86 : vector<8x128xf32> to vector<8x128xbf16>
    %cst_26 = arith.constant dense<0.000000e+00> : vector<8x384xf32>
    %92 = tpu.matmul %91, %7, %cst_26 {dimension_numbers = #tpu.dot_dimension_numbers<[1], [0], [0], [1], [0, 0, 1, 1], [], []>} : vector<8x128xbf16>, vector<128x384xbf16>, vector<8x384xf32> -> vector<8x384xf32>
    %93 = arith.addf %92, %10 : vector<8x384xf32>
    %94 = vector.extract_strided_slice %90 {offsets = [0, 0], sizes = [8, 256], strides = [1, 1]} : vector<8x384xf32> to vector<8x256xf32>
    %95 = vector.extract_strided_slice %93 {offsets = [0, 0], sizes = [8, 256], strides = [1, 1]} : vector<8x384xf32> to vector<8x256xf32>
    %96 = arith.addf %94, %95 : vector<8x256xf32>
    %97 = arith.negf %96 : vector<8x256xf32>
    %98 = math.exp %97 : vector<8x256xf32>
    %cst_27 = arith.constant 1.000000e+00 : f32
    %99 = vector.broadcast %cst_27 : f32 to vector<8x256xf32>
    %100 = arith.addf %99, %98 : vector<8x256xf32>
    %101 = arith.divf %99, %100 : vector<8x256xf32>
    %102 = vector.extract_strided_slice %101 {offsets = [0, 0], sizes = [8, 128], strides = [1, 1]} : vector<8x256xf32> to vector<8x128xf32>
    %103 = vector.extract_strided_slice %101 {offsets = [0, 128], sizes = [8, 128], strides = [1, 1]} : vector<8x256xf32> to vector<8x128xf32>
    %104 = vector.extract_strided_slice %90 {offsets = [0, 256], sizes = [8, 128], strides = [1, 1]} : vector<8x384xf32> to vector<8x128xf32>
    %105 = vector.extract_strided_slice %93 {offsets = [0, 256], sizes = [8, 128], strides = [1, 1]} : vector<8x384xf32> to vector<8x128xf32>
    %106 = arith.mulf %102, %105 : vector<8x128xf32>
    %107 = arith.addf %104, %106 : vector<8x128xf32>
    %108 = math.tanh %107 : vector<8x128xf32>
    %109 = arith.subf %86, %108 : vector<8x128xf32>
    %110 = arith.mulf %103, %109 : vector<8x128xf32>
    %111 = arith.addf %108, %110 : vector<8x128xf32>
    %c4_i32 = arith.constant 4 : i32
    %c8_i32_28 = arith.constant 8 : i32
    %112 = arith.muli %c4_i32, %c8_i32_28 : i32
    %113 = tpu.assume_multiple %112, 8 : i32
    %114 = arith.index_cast %113 : i32 to index
    %c0_29 = arith.constant 0 : index
    %115 = vector.load %arg6[%114, %c0_29] : memref<64x384xf32, #tpu.memory_space<vmem>>, vector<8x384xf32>
    %116 = arith.truncf %111 : vector<8x128xf32> to vector<8x128xbf16>
    %cst_30 = arith.constant dense<0.000000e+00> : vector<8x384xf32>
    %117 = tpu.matmul %116, %7, %cst_30 {dimension_numbers = #tpu.dot_dimension_numbers<[1], [0], [0], [1], [0, 0, 1, 1], [], []>} : vector<8x128xbf16>, vector<128x384xbf16>, vector<8x384xf32> -> vector<8x384xf32>
    %118 = arith.addf %117, %10 : vector<8x384xf32>
    %119 = vector.extract_strided_slice %115 {offsets = [0, 0], sizes = [8, 256], strides = [1, 1]} : vector<8x384xf32> to vector<8x256xf32>
    %120 = vector.extract_strided_slice %118 {offsets = [0, 0], sizes = [8, 256], strides = [1, 1]} : vector<8x384xf32> to vector<8x256xf32>
    %121 = arith.addf %119, %120 : vector<8x256xf32>
    %122 = arith.negf %121 : vector<8x256xf32>
    %123 = math.exp %122 : vector<8x256xf32>
    %cst_31 = arith.constant 1.000000e+00 : f32
    %124 = vector.broadcast %cst_31 : f32 to vector<8x256xf32>
    %125 = arith.addf %124, %123 : vector<8x256xf32>
    %126 = arith.divf %124, %125 : vector<8x256xf32>
    %127 = vector.extract_strided_slice %126 {offsets = [0, 0], sizes = [8, 128], strides = [1, 1]} : vector<8x256xf32> to vector<8x128xf32>
    %128 = vector.extract_strided_slice %126 {offsets = [0, 128], sizes = [8, 128], strides = [1, 1]} : vector<8x256xf32> to vector<8x128xf32>
    %129 = vector.extract_strided_slice %115 {offsets = [0, 256], sizes = [8, 128], strides = [1, 1]} : vector<8x384xf32> to vector<8x128xf32>
    %130 = vector.extract_strided_slice %118 {offsets = [0, 256], sizes = [8, 128], strides = [1, 1]} : vector<8x384xf32> to vector<8x128xf32>
    %131 = arith.mulf %127, %130 : vector<8x128xf32>
    %132 = arith.addf %129, %131 : vector<8x128xf32>
    %133 = math.tanh %132 : vector<8x128xf32>
    %134 = arith.subf %111, %133 : vector<8x128xf32>
    %135 = arith.mulf %128, %134 : vector<8x128xf32>
    %136 = arith.addf %133, %135 : vector<8x128xf32>
    %c5_i32 = arith.constant 5 : i32
    %c8_i32_32 = arith.constant 8 : i32
    %137 = arith.muli %c5_i32, %c8_i32_32 : i32
    %138 = tpu.assume_multiple %137, 8 : i32
    %139 = arith.index_cast %138 : i32 to index
    %c0_33 = arith.constant 0 : index
    %140 = vector.load %arg6[%139, %c0_33] : memref<64x384xf32, #tpu.memory_space<vmem>>, vector<8x384xf32>
    %141 = arith.truncf %136 : vector<8x128xf32> to vector<8x128xbf16>
    %cst_34 = arith.constant dense<0.000000e+00> : vector<8x384xf32>
    %142 = tpu.matmul %141, %7, %cst_34 {dimension_numbers = #tpu.dot_dimension_numbers<[1], [0], [0], [1], [0, 0, 1, 1], [], []>} : vector<8x128xbf16>, vector<128x384xbf16>, vector<8x384xf32> -> vector<8x384xf32>
    %143 = arith.addf %142, %10 : vector<8x384xf32>
    %144 = vector.extract_strided_slice %140 {offsets = [0, 0], sizes = [8, 256], strides = [1, 1]} : vector<8x384xf32> to vector<8x256xf32>
    %145 = vector.extract_strided_slice %143 {offsets = [0, 0], sizes = [8, 256], strides = [1, 1]} : vector<8x384xf32> to vector<8x256xf32>
    %146 = arith.addf %144, %145 : vector<8x256xf32>
    %147 = arith.negf %146 : vector<8x256xf32>
    %148 = math.exp %147 : vector<8x256xf32>
    %cst_35 = arith.constant 1.000000e+00 : f32
    %149 = vector.broadcast %cst_35 : f32 to vector<8x256xf32>
    %150 = arith.addf %149, %148 : vector<8x256xf32>
    %151 = arith.divf %149, %150 : vector<8x256xf32>
    %152 = vector.extract_strided_slice %151 {offsets = [0, 0], sizes = [8, 128], strides = [1, 1]} : vector<8x256xf32> to vector<8x128xf32>
    %153 = vector.extract_strided_slice %151 {offsets = [0, 128], sizes = [8, 128], strides = [1, 1]} : vector<8x256xf32> to vector<8x128xf32>
    %154 = vector.extract_strided_slice %140 {offsets = [0, 256], sizes = [8, 128], strides = [1, 1]} : vector<8x384xf32> to vector<8x128xf32>
    %155 = vector.extract_strided_slice %143 {offsets = [0, 256], sizes = [8, 128], strides = [1, 1]} : vector<8x384xf32> to vector<8x128xf32>
    %156 = arith.mulf %152, %155 : vector<8x128xf32>
    %157 = arith.addf %154, %156 : vector<8x128xf32>
    %158 = math.tanh %157 : vector<8x128xf32>
    %159 = arith.subf %136, %158 : vector<8x128xf32>
    %160 = arith.mulf %153, %159 : vector<8x128xf32>
    %161 = arith.addf %158, %160 : vector<8x128xf32>
    %c6_i32 = arith.constant 6 : i32
    %c8_i32_36 = arith.constant 8 : i32
    %162 = arith.muli %c6_i32, %c8_i32_36 : i32
    %163 = tpu.assume_multiple %162, 8 : i32
    %164 = arith.index_cast %163 : i32 to index
    %c0_37 = arith.constant 0 : index
    %165 = vector.load %arg6[%164, %c0_37] : memref<64x384xf32, #tpu.memory_space<vmem>>, vector<8x384xf32>
    %166 = arith.truncf %161 : vector<8x128xf32> to vector<8x128xbf16>
    %cst_38 = arith.constant dense<0.000000e+00> : vector<8x384xf32>
    %167 = tpu.matmul %166, %7, %cst_38 {dimension_numbers = #tpu.dot_dimension_numbers<[1], [0], [0], [1], [0, 0, 1, 1], [], []>} : vector<8x128xbf16>, vector<128x384xbf16>, vector<8x384xf32> -> vector<8x384xf32>
    %168 = arith.addf %167, %10 : vector<8x384xf32>
    %169 = vector.extract_strided_slice %165 {offsets = [0, 0], sizes = [8, 256], strides = [1, 1]} : vector<8x384xf32> to vector<8x256xf32>
    %170 = vector.extract_strided_slice %168 {offsets = [0, 0], sizes = [8, 256], strides = [1, 1]} : vector<8x384xf32> to vector<8x256xf32>
    %171 = arith.addf %169, %170 : vector<8x256xf32>
    %172 = arith.negf %171 : vector<8x256xf32>
    %173 = math.exp %172 : vector<8x256xf32>
    %cst_39 = arith.constant 1.000000e+00 : f32
    %174 = vector.broadcast %cst_39 : f32 to vector<8x256xf32>
    %175 = arith.addf %174, %173 : vector<8x256xf32>
    %176 = arith.divf %174, %175 : vector<8x256xf32>
    %177 = vector.extract_strided_slice %176 {offsets = [0, 0], sizes = [8, 128], strides = [1, 1]} : vector<8x256xf32> to vector<8x128xf32>
    %178 = vector.extract_strided_slice %176 {offsets = [0, 128], sizes = [8, 128], strides = [1, 1]} : vector<8x256xf32> to vector<8x128xf32>
    %179 = vector.extract_strided_slice %165 {offsets = [0, 256], sizes = [8, 128], strides = [1, 1]} : vector<8x384xf32> to vector<8x128xf32>
    %180 = vector.extract_strided_slice %168 {offsets = [0, 256], sizes = [8, 128], strides = [1, 1]} : vector<8x384xf32> to vector<8x128xf32>
    %181 = arith.mulf %177, %180 : vector<8x128xf32>
    %182 = arith.addf %179, %181 : vector<8x128xf32>
    %183 = math.tanh %182 : vector<8x128xf32>
    %184 = arith.subf %161, %183 : vector<8x128xf32>
    %185 = arith.mulf %178, %184 : vector<8x128xf32>
    %186 = arith.addf %183, %185 : vector<8x128xf32>
    %c7_i32 = arith.constant 7 : i32
    %c8_i32_40 = arith.constant 8 : i32
    %187 = arith.muli %c7_i32, %c8_i32_40 : i32
    %188 = tpu.assume_multiple %187, 8 : i32
    %189 = arith.index_cast %188 : i32 to index
    %c0_41 = arith.constant 0 : index
    %190 = vector.load %arg6[%189, %c0_41] : memref<64x384xf32, #tpu.memory_space<vmem>>, vector<8x384xf32>
    %191 = arith.truncf %186 : vector<8x128xf32> to vector<8x128xbf16>
    %cst_42 = arith.constant dense<0.000000e+00> : vector<8x384xf32>
    %192 = tpu.matmul %191, %7, %cst_42 {dimension_numbers = #tpu.dot_dimension_numbers<[1], [0], [0], [1], [0, 0, 1, 1], [], []>} : vector<8x128xbf16>, vector<128x384xbf16>, vector<8x384xf32> -> vector<8x384xf32>
    %193 = arith.addf %192, %10 : vector<8x384xf32>
    %194 = vector.extract_strided_slice %190 {offsets = [0, 0], sizes = [8, 256], strides = [1, 1]} : vector<8x384xf32> to vector<8x256xf32>
    %195 = vector.extract_strided_slice %193 {offsets = [0, 0], sizes = [8, 256], strides = [1, 1]} : vector<8x384xf32> to vector<8x256xf32>
    %196 = arith.addf %194, %195 : vector<8x256xf32>
    %197 = arith.negf %196 : vector<8x256xf32>
    %198 = math.exp %197 : vector<8x256xf32>
    %cst_43 = arith.constant 1.000000e+00 : f32
    %199 = vector.broadcast %cst_43 : f32 to vector<8x256xf32>
    %200 = arith.addf %199, %198 : vector<8x256xf32>
    %201 = arith.divf %199, %200 : vector<8x256xf32>
    %202 = vector.extract_strided_slice %201 {offsets = [0, 0], sizes = [8, 128], strides = [1, 1]} : vector<8x256xf32> to vector<8x128xf32>
    %203 = vector.extract_strided_slice %201 {offsets = [0, 128], sizes = [8, 128], strides = [1, 1]} : vector<8x256xf32> to vector<8x128xf32>
    %204 = vector.extract_strided_slice %190 {offsets = [0, 256], sizes = [8, 128], strides = [1, 1]} : vector<8x384xf32> to vector<8x128xf32>
    %205 = vector.extract_strided_slice %193 {offsets = [0, 256], sizes = [8, 128], strides = [1, 1]} : vector<8x384xf32> to vector<8x128xf32>
    %206 = arith.mulf %202, %205 : vector<8x128xf32>
    %207 = arith.addf %204, %206 : vector<8x128xf32>
    %208 = math.tanh %207 : vector<8x128xf32>
    %209 = arith.subf %186, %208 : vector<8x128xf32>
    %210 = arith.mulf %203, %209 : vector<8x128xf32>
    %211 = arith.addf %208, %210 : vector<8x128xf32>
    %c8_i32_44 = arith.constant 8 : i32
    %c0_45 = arith.constant 0 : index
    %c0_46 = arith.constant 0 : index
    %212 = vector.load %arg7[%c0_45, %c0_46] : memref<8x128xf32, #tpu.memory_space<vmem>>, vector<8x128xf32>
    tpu.vector_store %arg7[%c0_45, %c0_46], %211 {strides = array<i32>} : memref<8x128xf32, #tpu.memory_space<vmem>>, vector<8x128xf32>,
    %c0_i32_47 = arith.constant 0 : i32
    %213 = arith.cmpi eq, %arg0, %c0_i32_47 : i32
    %214 = arith.extui %213 : i1 to i32
    %c0_i32_48 = arith.constant 0 : i32
    %215 = arith.cmpi ne, %214, %c0_i32_48 : i32
    scf.if %215 {
      %c0_49 = arith.constant 0 : index
      %c0_50 = arith.constant 0 : index
      %216 = vector.load %arg5[%c0_49, %c0_50] : memref<8x128xf32, #tpu.memory_space<vmem>>, vector<8x128xf32>
      tpu.vector_store %arg5[%c0_49, %c0_50], %211 {strides = array<i32>} : memref<8x128xf32, #tpu.memory_space<vmem>>, vector<8x128xf32>,
    } else {
    }
    return
  }
  func.func @transform_0(%arg0: i32) -> (i32, i32) {
    %c0_i32 = arith.constant 0 : i32
    %c0_i32_0 = arith.constant 0 : i32
    return %arg0, %c0_i32 : i32, i32
  }
  func.func @transform_1(%arg0: i32) -> (i32, i32) {
    %c0_i32 = arith.constant 0 : i32
    %c0_i32_0 = arith.constant 0 : i32
    %c0_i32_1 = arith.constant 0 : i32
    return %c0_i32, %c0_i32_0 : i32, i32
  }
  func.func @transform_2(%arg0: i32) -> (i32, i32) {
    %c0_i32 = arith.constant 0 : i32
    %c0_i32_0 = arith.constant 0 : i32
    %c0_i32_1 = arith.constant 0 : i32
    return %c0_i32, %c0_i32_0 : i32, i32
  }
  func.func @transform_3(%arg0: i32) -> (i32, i32) {
    %c0_i32 = arith.constant 0 : i32
    %c0_i32_0 = arith.constant 0 : i32
    %c0_i32_1 = arith.constant 0 : i32
    return %c0_i32, %c0_i32_0 : i32, i32
  }
  func.func @transform_4(%arg0: i32) -> (i32, i32) {
    %c0_i32 = arith.constant 0 : i32
    %c0_i32_0 = arith.constant 0 : i32
    %c0_i32_1 = arith.constant 0 : i32
    return %c0_i32, %c0_i32_0 : i32, i32
  }
}

</mosaic_0001>

<llo_original>
// kernel: gru_forward.1
$region0: #{gru_forward.1}
  #allocation0 [shape = 'u32[]', space=smem, size = 0x4, offset = 0x4, fixed_abs, tag = 'smem constant byte address 0x4 - core index']
  #allocation1 [shape = 'u32[144,128]{1,0:T(1,128)}', space=vmem, size = 0x12000, scoped, tag = 'internal scratch']
  #allocation2 [shape = 'f32[64,384]{1,0:T(8,128)}', space=vmem, size = 0x18000, scoped, tag = 'scratch operand']
  #allocation3 [shape = 'f32[8,128]{1,0:T(8,128)}', space=vmem, size = 0x1000, scoped, tag = 'scratch operand']
  %s0 = inlined_call_operand.vmem [shape: bf16[64,16], index: 0, kind: input, shape index: {}]
  %s1 = inlined_call_operand.vmem [shape: bf16[16,384], index: 1, kind: input, shape index: {}]
  %s2 = inlined_call_operand.vmem [shape: bf16[128,384], index: 2, kind: input, shape index: {}]
  %s3 = inlined_call_operand.vmem [shape: f32[1,384], index: 3, kind: input, shape index: {}]
  %s4 = inlined_call_operand.vmem [shape: f32[8,128], index: 4, kind: output, shape index: {}]
  %s5 = sld [smem:[#allocation0]]
  $region34: #{gru_forward.1} parent=0
    _
  %s7 = ssub.s32 1, %s5
  %s8 = scalar_select 0, %s7, %s5
  // Predicated region
  $region2: #{gru_forward.1} parent=0 // pred_check
    _
  $region3: #{gru_forward.1} parent=0 // pred_check_branch
    %10 = sbr.rel (0) target = $region5
  $region4: #{gru_forward.1} parent=0 // pred_region
    _
  $region5: #{gru_forward.1} parent=0 // pred_fallthru
    _
  // Predicated region
  $region6: #{gru_forward.1} parent=0 // pred_check
    _
  $region7: #{gru_forward.1} parent=0 // pred_check_branch
    %12 = sbr.rel (0) target = $region9
  $region8: #{gru_forward.1} parent=0 // pred_region
    _
  $region9: #{gru_forward.1} parent=0 // pred_fallthru
    _
  // Predicated region
  $region10: #{gru_forward.1} parent=0 // pred_check
    _
  $region11: #{gru_forward.1} parent=0 // pred_check_branch
    %14 = sbr.rel (0) target = $region13
  $region12: #{gru_forward.1} parent=0 // pred_region
    _
  $region13: #{gru_forward.1} parent=0 // pred_fallthru
    _
  // Predicated region
  $region14: #{gru_forward.1} parent=0 // pred_check
    _
  $region15: #{gru_forward.1} parent=0 // pred_check_branch
    %16 = sbr.rel (0) target = $region17
  $region16: #{gru_forward.1} parent=0 // pred_region
    _
  $region17: #{gru_forward.1} parent=0 // pred_fallthru
    _
  %v18 = vld [vmem:[%s0] sm:$0xf]
  %v19 = vld [vmem:[%s0 + $0x4] sm:$0xf]
  %v20 = vld [vmem:[%s0 + $0x8] sm:$0xf]
  %v21 = vld [vmem:[%s0 + $0xc] sm:$0xf]
  %v22 = vld [vmem:[%s0 + $0x10] sm:$0xf]
  %v23 = vld [vmem:[%s0 + $0x14] sm:$0xf]
  %v24 = vld [vmem:[%s0 + $0x18] sm:$0xf]
  %v25 = vld [vmem:[%s0 + $0x1c] sm:$0xf]
  %v26 = vld [vmem:[%s1] sm:$0xff]
  %v27 = vld [vmem:[%s1 + $0x8] sm:$0xf]
  %v28 = vld [vmem:[%s1 + $0xc] sm:$0xff]
  %v29 = vld [vmem:[%s1 + $0x14] sm:$0xf]
  %v38 = vunpack.c.l.b16 %v18
  %v39 = vunpack.c.l.b16 %v19
  %v40 = vunpack.c.l.b16 %v20
  %v41 = vunpack.c.l.b16 %v21
  %v42 = vunpack.c.l.b16 %v22
  %v43 = vunpack.c.l.b16 %v23
  %v44 = vunpack.c.l.b16 %v24
  %v45 = vunpack.c.l.b16 %v25
  %v46 = vpack.c.b16 %v39, %v38
  %v47 = vpack.c.b16 %v41, %v40
  %v48 = vpack.c.b16 %v43, %v42
  %v49 = vpack.c.b16 %v45, %v44
  %v54 = vunpack.c.l.b16 %v26
  %v55 = vunpack.c.h.b16 %v26
  %v56 = vunpack.c.l.b16 %v27
  %v57 = vunpack.c.l.b16 %v28
  %v58 = vunpack.c.h.b16 %v28
  %v59 = vunpack.c.l.b16 %v29
  %v60 = vpack.c.b16 %v57, %v54
  %v61 = vpack.c.b16 %v58, %v55
  %v62 = vpack.c.b16 %v59, %v56
  %vm66 = vcmask 130048
  %v68 = vsel %vm66, %v46, 0
  %v71 = vsel %vm66, %v47, 0
  %v74 = vsel %vm66, %v48, 0
  %v77 = vsel %vm66, %v49, 0
  %79 = vmatprep.subr.bf16.mxu0 %v61
  %80 = vmatpush1.bf16.msra.mxu0 %v60
  %81 = vmatprep.subr.bf16.mxu0 0
  %82 = vmatpush1.bf16.msra.mxu0 0
  %83 = vmatprep.subr.bf16.mxu0 0
  %84 = vmatpush1.bf16.msra.mxu0 0
  %85 = vmatprep.subr.bf16.mxu0 0
  %86 = vmatpush1.bf16.msra.mxu0 0
  %87 = vmatprep.subr.bf16.mxu0 0
  %88 = vmatpush1.bf16.msra.mxu0 0
  %89 = vmatprep.subr.bf16.mxu0 0
  %90 = vmatpush1.bf16.msra.mxu0 0
  %91 = vmatprep.subr.bf16.mxu0 0
  %92 = vmatpush1.bf16.msra.mxu0 0
  %93 = vmatprep.subr.bf16.mxu0 0
  %94 = vmatpush1.bf16.msra.mxu0 0
  %95 = vmatprep.subr.bf16.mxu0 0
  %96 = vmatpush1.bf16.msra.mxu0 0
  %97 = vmatprep.subr.bf16.mxu0 0
  %98 = vmatpush1.bf16.msra.mxu0 0
  %99 = vmatprep.subr.bf16.mxu0 0
  %100 = vmatpush1.bf16.msra.mxu0 0
  %101 = vmatprep.subr.bf16.mxu0 0
  %102 = vmatpush1.bf16.msra.mxu0 0
  %103 = vmatprep.subr.bf16.mxu0 0
  %104 = vmatpush1.bf16.msra.mxu0 0
  %105 = vmatprep.subr.bf16.mxu0 0
  %106 = vmatpush1.bf16.msra.mxu0 0
  %107 = vmatprep.subr.bf16.mxu0 0
  %108 = vmatpush1.bf16.msra.mxu0 0
  %109 = vmatprep.subr.bf16.mxu0 0
  %110 = vmatpush1.bf16.msra.mxu0 0
  %111 = vmatprep.mubr.bf16.mxu0 0
  %112 = vmatmul.mubr.bf16.gmra.mrb[0].mxu0 %v68
  %v113 = vpop.f32.mrb[0].mxu0
  %v114 = vadd.f32 0.0, %v113
  %v115 = vpop.f32.mrb[0].mxu0
  %v116 = vadd.f32 0.0, %v115
  %v117 = vpop.f32.mrb[0].mxu0
  %v118 = vadd.f32 0.0, %v117
  %v119 = vpop.f32.mrb[0].mxu0
  %v120 = vadd.f32 0.0, %v119
  %121 = vmatprep.mubr.bf16.mxu0 0
  %122 = vmatmul.mubr.bf16.gmra.mrb[0].mxu0 %v71
  %v123 = vpop.f32.mrb[0].mxu0
  %v124 = vadd.f32 0.0, %v123
  %v125 = vpop.f32.mrb[0].mxu0
  %v126 = vadd.f32 0.0, %v125
  %v127 = vpop.f32.mrb[0].mxu0
  %v128 = vadd.f32 0.0, %v127
  %v129 = vpop.f32.mrb[0].mxu0
  %v130 = vadd.f32 0.0, %v129
  %131 = vmatprep.mubr.bf16.mxu0 0
  %132 = vmatmul.mubr.bf16.gmra.mrb[0].mxu0 %v74
  %v133 = vpop.f32.mrb[0].mxu0
  %v134 = vadd.f32 0.0, %v133
  %v135 = vpop.f32.mrb[0].mxu0
  %v136 = vadd.f32 0.0, %v135
  %v137 = vpop.f32.mrb[0].mxu0
  %v138 = vadd.f32 0.0, %v137
  %v139 = vpop.f32.mrb[0].mxu0
  %v140 = vadd.f32 0.0, %v139
  %141 = vmatprep.mubr.bf16.mxu0 0
  %142 = vmatmul.mubr.bf16.gmra.mrb[0].mxu0 %v77
  %v143 = vpop.f32.mrb[0].mxu0
  %v144 = vadd.f32 0.0, %v143
  %v145 = vpop.f32.mrb[0].mxu0
  %v146 = vadd.f32 0.0, %v145
  %v147 = vpop.f32.mrb[0].mxu0
  %v148 = vadd.f32 0.0, %v147
  %v149 = vpop.f32.mrb[0].mxu0
  %v150 = vadd.f32 0.0, %v149
  %151 = vdwg.mxu0
  %152 = vmatprep.subr.bf16.mxu0 0
  %153 = vmatpush1.bf16.msra.mxu0 %v62
  %154 = vmatprep.subr.bf16.mxu0 0
  %155 = vmatpush1.bf16.msra.mxu0 0
  %156 = vmatprep.subr.bf16.mxu0 0
  %157 = vmatpush1.bf16.msra.mxu0 0
  %158 = vmatprep.subr.bf16.mxu0 0
  %159 = vmatpush1.bf16.msra.mxu0 0
  %160 = vmatprep.subr.bf16.mxu0 0
  %161 = vmatpush1.bf16.msra.mxu0 0
  %162 = vmatprep.subr.bf16.mxu0 0
  %163 = vmatpush1.bf16.msra.mxu0 0
  %164 = vmatprep.subr.bf16.mxu0 0
  %165 = vmatpush1.bf16.msra.mxu0 0
  %166 = vmatprep.subr.bf16.mxu0 0
  %167 = vmatpush1.bf16.msra.mxu0 0
  %168 = vmatprep.subr.bf16.mxu0 0
  %169 = vmatpush1.bf16.msra.mxu0 0
  %170 = vmatprep.subr.bf16.mxu0 0
  %171 = vmatpush1.bf16.msra.mxu0 0
  %172 = vmatprep.subr.bf16.mxu0 0
  %173 = vmatpush1.bf16.msra.mxu0 0
  %174 = vmatprep.subr.bf16.mxu0 0
  %175 = vmatpush1.bf16.msra.mxu0 0
  %176 = vmatprep.subr.bf16.mxu0 0
  %177 = vmatpush1.bf16.msra.mxu0 0
  %178 = vmatprep.subr.bf16.mxu0 0
  %179 = vmatpush1.bf16.msra.mxu0 0
  %180 = vmatprep.subr.bf16.mxu0 0
  %181 = vmatpush1.bf16.msra.mxu0 0
  %182 = vmatprep.subr.bf16.mxu0 0
  %183 = vmatpush1.bf16.msra.mxu0 0
  %184 = vmatprep.mubr.bf16.mxu0 0
  %185 = vmatmul.mubr.bf16.gmra.mrb[0].mxu0 %v68
  %v186 = vpop.f32.mrb[0].mxu0
  %v187 = vadd.f32 0.0, %v186
  %v188 = vpop.f32.mrb[0].mxu0
  %v189 = vpop.f32.mrb[0].mxu0
  %v190 = vadd.f32 0.0, %v189
  %v191 = vpop.f32.mrb[0].mxu0
  %192 = vmatprep.mubr.bf16.mxu0 0
  %193 = vmatmul.mubr.bf16.gmra.mrb[0].mxu0 %v71
  %v194 = vpop.f32.mrb[0].mxu0
  %v195 = vadd.f32 0.0, %v194
  %v196 = vpop.f32.mrb[0].mxu0
  %v197 = vpop.f32.mrb[0].mxu0
  %v198 = vadd.f32 0.0, %v197
  %v199 = vpop.f32.mrb[0].mxu0
  %200 = vmatprep.mubr.bf16.mxu0 0
  %201 = vmatmul.mubr.bf16.gmra.mrb[0].mxu0 %v74
  %v202 = vpop.f32.mrb[0].mxu0
  %v203 = vadd.f32 0.0, %v202
  %v204 = vpop.f32.mrb[0].mxu0
  %v205 = vpop.f32.mrb[0].mxu0
  %v206 = vadd.f32 0.0, %v205
  %v207 = vpop.f32.mrb[0].mxu0
  %208 = vmatprep.mubr.bf16.mxu0 0
  %209 = vmatmul.mubr.bf16.gmra.mrb[0].mxu0 %v77
  %v210 = vpop.f32.mrb[0].mxu0
  %v211 = vadd.f32 0.0, %v210
  %v212 = vpop.f32.mrb[0].mxu0
  %v213 = vpop.f32.mrb[0].mxu0
  %v214 = vadd.f32 0.0, %v213
  %v215 = vpop.f32.mrb[0].mxu0
  %216 = vdwg.mxu0
  %217 = vst [vmem:[#allocation2] sm:$0xff] %v114
  %218 = vst [vmem:[#allocation2 + $0x8] sm:$0xff] %v116
  %219 = vst [vmem:[#allocation2 + $0x10] sm:$0xff] %v187
  %220 = vst [vmem:[#allocation2 + $0x18] sm:$0xff] %v118
  %221 = vst [vmem:[#allocation2 + $0x20] sm:$0xff] %v120
  %222 = vst [vmem:[#allocation2 + $0x28] sm:$0xff] %v190
  %223 = vst [vmem:[#allocation2 + $0x30] sm:$0xff] %v124
  %224 = vst [vmem:[#allocation2 + $0x38] sm:$0xff] %v126
  %225 = vst [vmem:[#allocation2 + $0x40] sm:$0xff] %v195
  %226 = vst [vmem:[#allocation2 + $0x48] sm:$0xff] %v128
  %227 = vst [vmem:[#allocation2 + $0x50] sm:$0xff] %v130
  %228 = vst [vmem:[#allocation2 + $0x58] sm:$0xff] %v198
  %229 = vst [vmem:[#allocation2 + $0x60] sm:$0xff] %v134
  %230 = vst [vmem:[#allocation2 + $0x68] sm:$0xff] %v136
  %231 = vst [vmem:[#allocation2 + $0x70] sm:$0xff] %v203
  %232 = vst [vmem:[#allocation2 + $0x78] sm:$0xff] %v138
  %233 = vst [vmem:[#allocation2 + $0x80] sm:$0xff] %v140
  %234 = vst [vmem:[#allocation2 + $0x88] sm:$0xff] %v206
  %235 = vst [vmem:[#allocation2 + $0x90] sm:$0xff] %v144
  %236 = vst [vmem:[#allocation2 + $0x98] sm:$0xff] %v146
  %237 = vst [vmem:[#allocation2 + $0xa0] sm:$0xff] %v211
  %238 = vst [vmem:[#allocation2 + $0xa8] sm:$0xff] %v148
  %239 = vst [vmem:[#allocation2 + $0xb0] sm:$0xff] %v150
  %240 = vst [vmem:[#allocation2 + $0xb8] sm:$0xff] %v214
  %p241 = scmp.eq.s32.totalorder 0, 0
  // Predicated region
  $region18: #{gru_forward.1} parent=0 // pred_check
    %p242 = pneg %p241
  $region19: #{gru_forward.1} parent=0 // pred_check_branch
    %244 = sbr.rel (%p242) target = $region21
  $region20: #{gru_forward.1} parent=0 // pred_region
    %245 = vst [vmem:[#allocation3] sm:$0xff] 0.0
  $region21: #{gru_forward.1} parent=0 // pred_fallthru
    _
  %v246 = vld [vmem:[%s2] sm:$0xff]
  %v247 = vld [vmem:[%s2 + $0x8] sm:$0xf]
  %v248 = vld [vmem:[%s2 + $0xc] sm:$0xff]
  %v249 = vld [vmem:[%s2 + $0x14] sm:$0xf]
  %v250 = vld [vmem:[%s2 + $0x18] sm:$0xff]
  %v251 = vld [vmem:[%s2 + $0x20] sm:$0xf]
  %v252 = vld [vmem:[%s2 + $0x24] sm:$0xff]
  %v253 = vld [vmem:[%s2 + $0x2c] sm:$0xf]
  %v254 = vld [vmem:[%s2 + $0x30] sm:$0xff]
  %v255 = vld [vmem:[%s2 + $0x38] sm:$0xf]
  %v256 = vld [vmem:[%s2 + $0x3c] sm:$0xff]
  %v257 = vld [vmem:[%s2 + $0x44] sm:$0xf]
  %v258 = vld [vmem:[%s2 + $0x48] sm:$0xff]
  %v259 = vld [vmem:[%s2 + $0x50] sm:$0xf]
  %v260 = vld [vmem:[%s2 + $0x54] sm:$0xff]
  %v261 = vld [vmem:[%s2 + $0x5c] sm:$0xf]
  %v262 = vld [vmem:[%s2 + $0x60] sm:$0xff]
  %v263 = vld [vmem:[%s2 + $0x68] sm:$0xf]
  %v264 = vld [vmem:[%s2 + $0x6c] sm:$0xff]
  %v265 = vld [vmem:[%s2 + $0x74] sm:$0xf]
  %v266 = vld [vmem:[%s2 + $0x78] sm:$0xff]
  %v267 = vld [vmem:[%s2 + $0x80] sm:$0xf]
  %v268 = vld [vmem:[%s2 + $0x84] sm:$0xff]
  %v269 = vld [vmem:[%s2 + $0x8c] sm:$0xf]
  %v270 = vld [vmem:[%s2 + $0x90] sm:$0xff]
  %v271 = vld [vmem:[%s2 + $0x98] sm:$0xf]
  %v272 = vld [vmem:[%s2 + $0x9c] sm:$0xff]
  %v273 = vld [vmem:[%s2 + $0xa4] sm:$0xf]
  %v274 = vld [vmem:[%s2 + $0xa8] sm:$0xff]
  %v275 = vld [vmem:[%s2 + $0xb0] sm:$0xf]
  %v276 = vld [vmem:[%s2 + $0xb4] sm:$0xff]
  %v277 = vld [vmem:[%s2 + $0xbc] sm:$0xf]
  %v278 = vld [vmem:[%s3] sm:$0x7]
  %v280 = vlaneseq
  %v281 = vshrl.u32 %v280, 7
  %v282 = vsub.s32 0, %v281
  %v283 = vrot.slane %v278, %v282
  %v284 = vlaneseq
  %v285 = vshrl.u32 %v284, 7
  %v286 = vsub.s32 1, %v285
  %v287 = vrot.slane %v278, %v286
  %v288 = vlaneseq
  %v289 = vshrl.u32 %v288, 7
  %v290 = vsub.s32 2, %v289
  %v291 = vrot.slane %v278, %v290
  %v295 = vld [vmem:[#allocation3] sm:$0xff]
  %s296 = smul.u32 0, 3
  %s297 = smul.addr %s296, 8
  %s298 = scalar_lea.vmem [#allocation2], %s297
  %v299 = vld [vmem:[%s298] sm:$0xff]
  %v300 = vld [vmem:[%s298 + $0x8] sm:$0xff]
  %v301 = vld [vmem:[%s298 + $0x10] sm:$0xff]
  %v302 = vpack.c.bf16 %v295, %v295
  %v335 = vunpack.c.l.b16 %v246
  %v336 = vunpack.c.h.b16 %v246
  %v337 = vunpack.c.l.b16 %v247
  %v338 = vunpack.c.l.b16 %v248
  %v339 = vunpack.c.h.b16 %v248
  %v340 = vunpack.c.l.b16 %v249
  %v341 = vunpack.c.l.b16 %v250
  %v342 = vunpack.c.h.b16 %v250
  %v343 = vunpack.c.l.b16 %v251
  %v344 = vunpack.c.l.b16 %v252
  %v345 = vunpack.c.h.b16 %v252
  %v346 = vunpack.c.l.b16 %v253
  %v347 = vunpack.c.l.b16 %v254
  %v348 = vunpack.c.h.b16 %v254
  %v349 = vunpack.c.l.b16 %v255
  %v350 = vunpack.c.l.b16 %v256
  %v351 = vunpack.c.h.b16 %v256
  %v352 = vunpack.c.l.b16 %v257
  %v353 = vunpack.c.l.b16 %v258
  %v354 = vunpack.c.h.b16 %v258
  %v355 = vunpack.c.l.b16 %v259
  %v356 = vunpack.c.l.b16 %v260
  %v357 = vunpack.c.h.b16 %v260
  %v358 = vunpack.c.l.b16 %v261
  %v359 = vunpack.c.l.b16 %v262
  %v360 = vunpack.c.h.b16 %v262
  %v361 = vunpack.c.l.b16 %v263
  %v362 = vunpack.c.l.b16 %v264
  %v363 = vunpack.c.h.b16 %v264
  %v364 = vunpack.c.l.b16 %v265
  %v365 = vunpack.c.l.b16 %v266
  %v366 = vunpack.c.h.b16 %v266
  %v367 = vunpack.c.l.b16 %v267
  %v368 = vunpack.c.l.b16 %v268
  %v369 = vunpack.c.h.b16 %v268
  %v370 = vunpack.c.l.b16 %v269
  %v371 = vunpack.c.l.b16 %v270
  %v372 = vunpack.c.h.b16 %v270
  %v373 = vunpack.c.l.b16 %v271
  %v374 = vunpack.c.l.b16 %v272
  %v375 = vunpack.c.h.b16 %v272
  %v376 = vunpack.c.l.b16 %v273
  %v377 = vunpack.c.l.b16 %v274
  %v378 = vunpack.c.h.b16 %v274
  %v379 = vunpack.c.l.b16 %v275
  %v380 = vunpack.c.l.b16 %v276
  %v381 = vunpack.c.h.b16 %v276
  %v382 = vunpack.c.l.b16 %v277
  %v383 = vpack.c.b16 %v338, %v335
  %v384 = vpack.c.b16 %v339, %v336
  %v385 = vpack.c.b16 %v340, %v337
  %v386 = vpack.c.b16 %v344, %v341
  %v387 = vpack.c.b16 %v345, %v342
  %v388 = vpack.c.b16 %v346, %v343
  %v389 = vpack.c.b16 %v350, %v347
  %v390 = vpack.c.b16 %v351, %v348
  %v391 = vpack.c.b16 %v352, %v349
  %v392 = vpack.c.b16 %v356, %v353
  %v393 = vpack.c.b16 %v357, %v354
  %v394 = vpack.c.b16 %v358, %v355
  %v395 = vpack.c.b16 %v362, %v359
  %v396 = vpack.c.b16 %v363, %v360
  %v397 = vpack.c.b16 %v364, %v361
  %v398 = vpack.c.b16 %v368, %v365
  %v399 = vpack.c.b16 %v369, %v366
  %v400 = vpack.c.b16 %v370, %v367
  %v401 = vpack.c.b16 %v374, %v371
  %v402 = vpack.c.b16 %v375, %v372
  %v403 = vpack.c.b16 %v376, %v373
  %v404 = vpack.c.b16 %v380, %v377
  %v405 = vpack.c.b16 %v381, %v378
  %v406 = vpack.c.b16 %v382, %v379
  %431 = vmatprep.subr.bf16.mxu0 %v384
  %432 = vmatpush1.bf16.msra.mxu0 %v383
  %433 = vmatprep.subr.bf16.mxu0 %v387
  %434 = vmatpush1.bf16.msra.mxu0 %v386
  %435 = vmatprep.subr.bf16.mxu0 %v390
  %436 = vmatpush1.bf16.msra.mxu0 %v389
  %437 = vmatprep.subr.bf16.mxu0 %v393
  %438 = vmatpush1.bf16.msra.mxu0 %v392
  %439 = vmatprep.subr.bf16.mxu0 %v396
  %440 = vmatpush1.bf16.msra.mxu0 %v395
  %441 = vmatprep.subr.bf16.mxu0 %v399
  %442 = vmatpush1.bf16.msra.mxu0 %v398
  %443 = vmatprep.subr.bf16.mxu0 %v402
  %444 = vmatpush1.bf16.msra.mxu0 %v401
  %445 = vmatprep.subr.bf16.mxu0 %v405
  %446 = vmatpush1.bf16.msra.mxu0 %v404
  %447 = vmatprep.subr.bf16.mxu0 0
  %448 = vmatpush1.bf16.msra.mxu0 0
  %449 = vmatprep.subr.bf16.mxu0 0
  %450 = vmatpush1.bf16.msra.mxu0 0
  %451 = vmatprep.subr.bf16.mxu0 0
  %452 = vmatpush1.bf16.msra.mxu0 0
  %453 = vmatprep.subr.bf16.mxu0 0
  %454 = vmatpush1.bf16.msra.mxu0 0
  %455 = vmatprep.subr.bf16.mxu0 0
  %456 = vmatpush1.bf16.msra.mxu0 0
  %457 = vmatprep.subr.bf16.mxu0 0
  %458 = vmatpush1.bf16.msra.mxu0 0
  %459 = vmatprep.subr.bf16.mxu0 0
  %460 = vmatpush1.bf16.msra.mxu0 0
  %461 = vmatprep.subr.bf16.mxu0 0
  %462 = vmatpush1.bf16.msra.mxu0 0
  %463 = vmatprep.mubr.bf16.mxu0 0
  %464 = vmatmul.mubr.bf16.gmra.mrb[0].mxu0 %v302
  %v465 = vpop.f32.mrb[0].mxu0
  %v466 = vadd.f32 %v283, %v465
  %v467 = vpop.f32.mrb[0].mxu0
  %v468 = vadd.f32 %v287, %v467
  %v469 = vpop.f32.mrb[0].mxu0
  %v470 = vpop.f32.mrb[0].mxu0
  %471 = vdwg.mxu0
  %472 = vmatprep.subr.bf16.mxu0 0
  %473 = vmatpush1.bf16.msra.mxu0 %v385
  %474 = vmatprep.subr.bf16.mxu0 0
  %475 = vmatpush1.bf16.msra.mxu0 %v388
  %476 = vmatprep.subr.bf16.mxu0 0
  %477 = vmatpush1.bf16.msra.mxu0 %v391
  %478 = vmatprep.subr.bf16.mxu0 0
  %479 = vmatpush1.bf16.msra.mxu0 %v394
  %480 = vmatprep.subr.bf16.mxu0 0
  %481 = vmatpush1.bf16.msra.mxu0 %v397
  %482 = vmatprep.subr.bf16.mxu0 0
  %483 = vmatpush1.bf16.msra.mxu0 %v400
  %484 = vmatprep.subr.bf16.mxu0 0
  %485 = vmatpush1.bf16.msra.mxu0 %v403
  %486 = vmatprep.subr.bf16.mxu0 0
  %487 = vmatpush1.bf16.msra.mxu0 %v406
  %488 = vmatprep.subr.bf16.mxu0 0
  %489 = vmatpush1.bf16.msra.mxu0 0
  %490 = vmatprep.subr.bf16.mxu0 0
  %491 = vmatpush1.bf16.msra.mxu0 0
  %492 = vmatprep.subr.bf16.mxu0 0
  %493 = vmatpush1.bf16.msra.mxu0 0
  %494 = vmatprep.subr.bf16.mxu0 0
  %495 = vmatpush1.bf16.msra.mxu0 0
  %496 = vmatprep.subr.bf16.mxu0 0
  %497 = vmatpush1.bf16.msra.mxu0 0
  %498 = vmatprep.subr.bf16.mxu0 0
  %499 = vmatpush1.bf16.msra.mxu0 0
  %500 = vmatprep.subr.bf16.mxu0 0
  %501 = vmatpush1.bf16.msra.mxu0 0
  %502 = vmatprep.subr.bf16.mxu0 0
  %503 = vmatpush1.bf16.msra.mxu0 0
  %504 = vmatprep.mubr.bf16.mxu0 0
  %505 = vmatmul.mubr.bf16.gmra.mrb[0].mxu0 %v302
  %v506 = vpop.f32.mrb[0].mxu0
  %v507 = vadd.f32 %v291, %v506
  %v508 = vpop.f32.mrb[0].mxu0
  %v509 = vpop.f32.mrb[0].mxu0
  %v510 = vpop.f32.mrb[0].mxu0
  %511 = vdwg.mxu0
  %v512 = vadd.f32 %v299, %v466
  %v513 = vadd.f32 %v300, %v468
  %v514 = vxor.u32 %v512, 2147483648
  %v515 = vxor.u32 %v513, 2147483648
  %v516 = vmul.f32 %v514, 1.442695
  %v517 = vpow.pop %v516
  %v518 = vmul.f32 %v515, 1.442695
  %v519 = vpow.pop %v518
  %v520 = vadd.f32 %v517, 1.0
  %v521 = vadd.f32 %v519, 1.0
  %v522 = vrcp.pop %v520
  %v523 = vmul.f32 1.0, %v522
  %v524 = vrcp.pop %v521
  %v525 = vmul.f32 1.0, %v524
  %v526 = vmul.f32 %v523, %v507
  %v527 = vadd.f32 %v301, %v526
  %v528 = vtanh.pop %v527
  %v529 = vsub.f32 %v295, %v528
  %v530 = vmul.f32 %v525, %v529
  %v531 = vadd.f32 %v528, %v530
  %s532 = smul.u32 1, 3
  %s533 = smul.addr %s532, 8
  %s534 = scalar_lea.vmem [#allocation2], %s533
  %v535 = vld [vmem:[%s534] sm:$0xff]
  %v536 = vld [vmem:[%s534 + $0x8] sm:$0xff]
  %v537 = vld [vmem:[%s534 + $0x10] sm:$0xff]
  %v538 = vpack.c.bf16 %v531, %v531
  %539 = vmatprep.subr.bf16.mxu0 %v384
  %540 = vmatpush1.bf16.msra.mxu0 %v383
  %541 = vmatprep.subr.bf16.mxu0 %v387
  %542 = vmatpush1.bf16.msra.mxu0 %v386
  %543 = vmatprep.subr.bf16.mxu0 %v390
  %544 = vmatpush1.bf16.msra.mxu0 %v389
  %545 = vmatprep.subr.bf16.mxu0 %v393
  %546 = vmatpush1.bf16.msra.mxu0 %v392
  %547 = vmatprep.subr.bf16.mxu0 %v396
  %548 = vmatpush1.bf16.msra.mxu0 %v395
  %549 = vmatprep.subr.bf16.mxu0 %v399
  %550 = vmatpush1.bf16.msra.mxu0 %v398
  %551 = vmatprep.subr.bf16.mxu0 %v402
  %552 = vmatpush1.bf16.msra.mxu0 %v401
  %553 = vmatprep.subr.bf16.mxu0 %v405
  %554 = vmatpush1.bf16.msra.mxu0 %v404
  %555 = vmatprep.subr.bf16.mxu0 0
  %556 = vmatpush1.bf16.msra.mxu0 0
  %557 = vmatprep.subr.bf16.mxu0 0
  %558 = vmatpush1.bf16.msra.mxu0 0
  %559 = vmatprep.subr.bf16.mxu0 0
  %560 = vmatpush1.bf16.msra.mxu0 0
  %561 = vmatprep.subr.bf16.mxu0 0
  %562 = vmatpush1.bf16.msra.mxu0 0
  %563 = vmatprep.subr.bf16.mxu0 0
  %564 = vmatpush1.bf16.msra.mxu0 0
  %565 = vmatprep.subr.bf16.mxu0 0
  %566 = vmatpush1.bf16.msra.mxu0 0
  %567 = vmatprep.subr.bf16.mxu0 0
  %568 = vmatpush1.bf16.msra.mxu0 0
  %569 = vmatprep.subr.bf16.mxu0 0
  %570 = vmatpush1.bf16.msra.mxu0 0
  %571 = vmatprep.mubr.bf16.mxu0 0
  %572 = vmatmul.mubr.bf16.gmra.mrb[0].mxu0 %v538
  %v573 = vpop.f32.mrb[0].mxu0
  %v574 = vadd.f32 %v283, %v573
  %v575 = vpop.f32.mrb[0].mxu0
  %v576 = vadd.f32 %v287, %v575
  %v577 = vpop.f32.mrb[0].mxu0
  %v578 = vpop.f32.mrb[0].mxu0
  %579 = vdwg.mxu0
  %580 = vmatprep.subr.bf16.mxu0 0
  %581 = vmatpush1.bf16.msra.mxu0 %v385
  %582 = vmatprep.subr.bf16.mxu0 0
  %583 = vmatpush1.bf16.msra.mxu0 %v388
  %584 = vmatprep.subr.bf16.mxu0 0
  %585 = vmatpush1.bf16.msra.mxu0 %v391
  %586 = vmatprep.subr.bf16.mxu0 0
  %587 = vmatpush1.bf16.msra.mxu0 %v394
  %588 = vmatprep.subr.bf16.mxu0 0
  %589 = vmatpush1.bf16.msra.mxu0 %v397
  %590 = vmatprep.subr.bf16.mxu0 0
  %591 = vmatpush1.bf16.msra.mxu0 %v400
  %592 = vmatprep.subr.bf16.mxu0 0
  %593 = vmatpush1.bf16.msra.mxu0 %v403
  %594 = vmatprep.subr.bf16.mxu0 0
  %595 = vmatpush1.bf16.msra.mxu0 %v406
  %596 = vmatprep.subr.bf16.mxu0 0
  %597 = vmatpush1.bf16.msra.mxu0 0
  %598 = vmatprep.subr.bf16.mxu0 0
  %599 = vmatpush1.bf16.msra.mxu0 0
  %600 = vmatprep.subr.bf16.mxu0 0
  %601 = vmatpush1.bf16.msra.mxu0 0
  %602 = vmatprep.subr.bf16.mxu0 0
  %603 = vmatpush1.bf16.msra.mxu0 0
  %604 = vmatprep.subr.bf16.mxu0 0
  %605 = vmatpush1.bf16.msra.mxu0 0
  %606 = vmatprep.subr.bf16.mxu0 0
  %607 = vmatpush1.bf16.msra.mxu0 0
  %608 = vmatprep.subr.bf16.mxu0 0
  %609 = vmatpush1.bf16.msra.mxu0 0
  %610 = vmatprep.subr.bf16.mxu0 0
  %611 = vmatpush1.bf16.msra.mxu0 0
  %612 = vmatprep.mubr.bf16.mxu0 0
  %613 = vmatmul.mubr.bf16.gmra.mrb[0].mxu0 %v538
  %v614 = vpop.f32.mrb[0].mxu0
  %v615 = vadd.f32 %v291, %v614
  %v616 = vpop.f32.mrb[0].mxu0
  %v617 = vpop.f32.mrb[0].mxu0
  %v618 = vpop.f32.mrb[0].mxu0
  %619 = vdwg.mxu0
  %v620 = vadd.f32 %v535, %v574
  %v621 = vadd.f32 %v536, %v576
  %v622 = vxor.u32 %v620, 2147483648
  %v623 = vxor.u32 %v621, 2147483648
  %v624 = vmul.f32 %v622, 1.442695
  %v625 = vpow.pop %v624
  %v626 = vmul.f32 %v623, 1.442695
  %v627 = vpow.pop %v626
  %v628 = vadd.f32 %v625, 1.0
  %v629 = vadd.f32 %v627, 1.0
  %v630 = vrcp.pop %v628
  %v631 = vmul.f32 1.0, %v630
  %v632 = vrcp.pop %v629
  %v633 = vmul.f32 1.0, %v632
  %v634 = vmul.f32 %v631, %v615
  %v635 = vadd.f32 %v537, %v634
  %v636 = vtanh.pop %v635
  %v637 = vsub.f32 %v531, %v636
  %v638 = vmul.f32 %v633, %v637
  %v639 = vadd.f32 %v636, %v638
  %s640 = smul.u32 2, 3
  %s641 = smul.addr %s640, 8
  %s642 = scalar_lea.vmem [#allocation2], %s641
  %v643 = vld [vmem:[%s642] sm:$0xff]
  %v644 = vld [vmem:[%s642 + $0x8] sm:$0xff]
  %v645 = vld [vmem:[%s642 + $0x10] sm:$0xff]
  %v646 = vpack.c.bf16 %v639, %v639
  %647 = vmatprep.subr.bf16.mxu0 %v384
  %648 = vmatpush1.bf16.msra.mxu0 %v383
  %649 = vmatprep.subr.bf16.mxu0 %v387
  %650 = vmatpush1.bf16.msra.mxu0 %v386
  %651 = vmatprep.subr.bf16.mxu0 %v390
  %652 = vmatpush1.bf16.msra.mxu0 %v389
  %653 = vmatprep.subr.bf16.mxu0 %v393
  %654 = vmatpush1.bf16.msra.mxu0 %v392
  %655 = vmatprep.subr.bf16.mxu0 %v396
  %656 = vmatpush1.bf16.msra.mxu0 %v395
  %657 = vmatprep.subr.bf16.mxu0 %v399
  %658 = vmatpush1.bf16.msra.mxu0 %v398
  %659 = vmatprep.subr.bf16.mxu0 %v402
  %660 = vmatpush1.bf16.msra.mxu0 %v401
  %661 = vmatprep.subr.bf16.mxu0 %v405
  %662 = vmatpush1.bf16.msra.mxu0 %v404
  %663 = vmatprep.subr.bf16.mxu0 0
  %664 = vmatpush1.bf16.msra.mxu0 0
  %665 = vmatprep.subr.bf16.mxu0 0
  %666 = vmatpush1.bf16.msra.mxu0 0
  %667 = vmatprep.subr.bf16.mxu0 0
  %668 = vmatpush1.bf16.msra.mxu0 0
  %669 = vmatprep.subr.bf16.mxu0 0
  %670 = vmatpush1.bf16.msra.mxu0 0
  %671 = vmatprep.subr.bf16.mxu0 0
  %672 = vmatpush1.bf16.msra.mxu0 0
  %673 = vmatprep.subr.bf16.mxu0 0
  %674 = vmatpush1.bf16.msra.mxu0 0
  %675 = vmatprep.subr.bf16.mxu0 0
  %676 = vmatpush1.bf16.msra.mxu0 0
  %677 = vmatprep.subr.bf16.mxu0 0
  %678 = vmatpush1.bf16.msra.mxu0 0
  %679 = vmatprep.mubr.bf16.mxu0 0
  %680 = vmatmul.mubr.bf16.gmra.mrb[0].mxu0 %v646
  %v681 = vpop.f32.mrb[0].mxu0
  %v682 = vadd.f32 %v283, %v681
  %v683 = vpop.f32.mrb[0].mxu0
  %v684 = vadd.f32 %v287, %v683
  %v685 = vpop.f32.mrb[0].mxu0
  %v686 = vpop.f32.mrb[0].mxu0
  %687 = vdwg.mxu0
  %688 = vmatprep.subr.bf16.mxu0 0
  %689 = vmatpush1.bf16.msra.mxu0 %v385
  %690 = vmatprep.subr.bf16.mxu0 0
  %691 = vmatpush1.bf16.msra.mxu0 %v388
  %692 = vmatprep.subr.bf16.mxu0 0
  %693 = vmatpush1.bf16.msra.mxu0 %v391
  %694 = vmatprep.subr.bf16.mxu0 0
  %695 = vmatpush1.bf16.msra.mxu0 %v394
  %696 = vmatprep.subr.bf16.mxu0 0
  %697 = vmatpush1.bf16.msra.mxu0 %v397
  %698 = vmatprep.subr.bf16.mxu0 0
  %699 = vmatpush1.bf16.msra.mxu0 %v400
  %700 = vmatprep.subr.bf16.mxu0 0
  %701 = vmatpush1.bf16.msra.mxu0 %v403
  %702 = vmatprep.subr.bf16.mxu0 0
  %703 = vmatpush1.bf16.msra.mxu0 %v406
  %704 = vmatprep.subr.bf16.mxu0 0
  %705 = vmatpush1.bf16.msra.mxu0 0
  %706 = vmatprep.subr.bf16.mxu0 0
  %707 = vmatpush1.bf16.msra.mxu0 0
  %708 = vmatprep.subr.bf16.mxu0 0
  %709 = vmatpush1.bf16.msra.mxu0 0
  %710 = vmatprep.subr.bf16.mxu0 0
  %711 = vmatpush1.bf16.msra.mxu0 0
  %712 = vmatprep.subr.bf16.mxu0 0
  %713 = vmatpush1.bf16.msra.mxu0 0
  %714 = vmatprep.subr.bf16.mxu0 0
  %715 = vmatpush1.bf16.msra.mxu0 0
  %716 = vmatprep.subr.bf16.mxu0 0
  %717 = vmatpush1.bf16.msra.mxu0 0
  %718 = vmatprep.subr.bf16.mxu0 0
  %719 = vmatpush1.bf16.msra.mxu0 0
  %720 = vmatprep.mubr.bf16.mxu0 0
  %721 = vmatmul.mubr.bf16.gmra.mrb[0].mxu0 %v646
  %v722 = vpop.f32.mrb[0].mxu0
  %v723 = vadd.f32 %v291, %v722
  %v724 = vpop.f32.mrb[0].mxu0
  %v725 = vpop.f32.mrb[0].mxu0
  %v726 = vpop.f32.mrb[0].mxu0
  %727 = vdwg.mxu0
  %v728 = vadd.f32 %v643, %v682
  %v729 = vadd.f32 %v644, %v684
  %v730 = vxor.u32 %v728, 2147483648
  %v731 = vxor.u32 %v729, 2147483648
  %v732 = vmul.f32 %v730, 1.442695
  %v733 = vpow.pop %v732
  %v734 = vmul.f32 %v731, 1.442695
  %v735 = vpow.pop %v734
  %v736 = vadd.f32 %v733, 1.0
  %v737 = vadd.f32 %v735, 1.0
  %v738 = vrcp.pop %v736
  %v739 = vmul.f32 1.0, %v738
  %v740 = vrcp.pop %v737
  %v741 = vmul.f32 1.0, %v740
  %v742 = vmul.f32 %v739, %v723
  %v743 = vadd.f32 %v645, %v742
  %v744 = vtanh.pop %v743
  %v745 = vsub.f32 %v639, %v744
  %v746 = vmul.f32 %v741, %v745
  %v747 = vadd.f32 %v744, %v746
  %s748 = smul.u32 3, 3
  %s749 = smul.addr %s748, 8
  %s750 = scalar_lea.vmem [#allocation2], %s749
  %v751 = vld [vmem:[%s750] sm:$0xff]
  %v752 = vld [vmem:[%s750 + $0x8] sm:$0xff]
  %v753 = vld [vmem:[%s750 + $0x10] sm:$0xff]
  %v754 = vpack.c.bf16 %v747, %v747
  %755 = vmatprep.subr.bf16.mxu0 %v384
  %756 = vmatpush1.bf16.msra.mxu0 %v383
  %757 = vmatprep.subr.bf16.mxu0 %v387
  %758 = vmatpush1.bf16.msra.mxu0 %v386
  %759 = vmatprep.subr.bf16.mxu0 %v390
  %760 = vmatpush1.bf16.msra.mxu0 %v389
  %761 = vmatprep.subr.bf16.mxu0 %v393
  %762 = vmatpush1.bf16.msra.mxu0 %v392
  %763 = vmatprep.subr.bf16.mxu0 %v396
  %764 = vmatpush1.bf16.msra.mxu0 %v395
  %765 = vmatprep.subr.bf16.mxu0 %v399
  %766 = vmatpush1.bf16.msra.mxu0 %v398
  %767 = vmatprep.subr.bf16.mxu0 %v402
  %768 = vmatpush1.bf16.msra.mxu0 %v401
  %769 = vmatprep.subr.bf16.mxu0 %v405
  %770 = vmatpush1.bf16.msra.mxu0 %v404
  %771 = vmatprep.subr.bf16.mxu0 0
  %772 = vmatpush1.bf16.msra.mxu0 0
  %773 = vmatprep.subr.bf16.mxu0 0
  %774 = vmatpush1.bf16.msra.mxu0 0
  %775 = vmatprep.subr.bf16.mxu0 0
  %776 = vmatpush1.bf16.msra.mxu0 0
  %777 = vmatprep.subr.bf16.mxu0 0
  %778 = vmatpush1.bf16.msra.mxu0 0
  %779 = vmatprep.subr.bf16.mxu0 0
  %780 = vmatpush1.bf16.msra.mxu0 0
  %781 = vmatprep.subr.bf16.mxu0 0
  %782 = vmatpush1.bf16.msra.mxu0 0
  %783 = vmatprep.subr.bf16.mxu0 0
  %784 = vmatpush1.bf16.msra.mxu0 0
  %785 = vmatprep.subr.bf16.mxu0 0
  %786 = vmatpush1.bf16.msra.mxu0 0
  %787 = vmatprep.mubr.bf16.mxu0 0
  %788 = vmatmul.mubr.bf16.gmra.mrb[0].mxu0 %v754
  %v789 = vpop.f32.mrb[0].mxu0
  %v790 = vadd.f32 %v283, %v789
  %v791 = vpop.f32.mrb[0].mxu0
  %v792 = vadd.f32 %v287, %v791
  %v793 = vpop.f32.mrb[0].mxu0
  %v794 = vpop.f32.mrb[0].mxu0
  %795 = vdwg.mxu0
  %796 = vmatprep.subr.bf16.mxu0 0
  %797 = vmatpush1.bf16.msra.mxu0 %v385
  %798 = vmatprep.subr.bf16.mxu0 0
  %799 = vmatpush1.bf16.msra.mxu0 %v388
  %800 = vmatprep.subr.bf16.mxu0 0
  %801 = vmatpush1.bf16.msra.mxu0 %v391
  %802 = vmatprep.subr.bf16.mxu0 0
  %803 = vmatpush1.bf16.msra.mxu0 %v394
  %804 = vmatprep.subr.bf16.mxu0 0
  %805 = vmatpush1.bf16.msra.mxu0 %v397
  %806 = vmatprep.subr.bf16.mxu0 0
  %807 = vmatpush1.bf16.msra.mxu0 %v400
  %808 = vmatprep.subr.bf16.mxu0 0
  %809 = vmatpush1.bf16.msra.mxu0 %v403
  %810 = vmatprep.subr.bf16.mxu0 0
  %811 = vmatpush1.bf16.msra.mxu0 %v406
  %812 = vmatprep.subr.bf16.mxu0 0
  %813 = vmatpush1.bf16.msra.mxu0 0
  %814 = vmatprep.subr.bf16.mxu0 0
  %815 = vmatpush1.bf16.msra.mxu0 0
  %816 = vmatprep.subr.bf16.mxu0 0
  %817 = vmatpush1.bf16.msra.mxu0 0
  %818 = vmatprep.subr.bf16.mxu0 0
  %819 = vmatpush1.bf16.msra.mxu0 0
  %820 = vmatprep.subr.bf16.mxu0 0
  %821 = vmatpush1.bf16.msra.mxu0 0
  %822 = vmatprep.subr.bf16.mxu0 0
  %823 = vmatpush1.bf16.msra.mxu0 0
  %824 = vmatprep.subr.bf16.mxu0 0
  %825 = vmatpush1.bf16.msra.mxu0 0
  %826 = vmatprep.subr.bf16.mxu0 0
  %827 = vmatpush1.bf16.msra.mxu0 0
  %828 = vmatprep.mubr.bf16.mxu0 0
  %829 = vmatmul.mubr.bf16.gmra.mrb[0].mxu0 %v754
  %v830 = vpop.f32.mrb[0].mxu0
  %v831 = vadd.f32 %v291, %v830
  %v832 = vpop.f32.mrb[0].mxu0
  %v833 = vpop.f32.mrb[0].mxu0
  %v834 = vpop.f32.mrb[0].mxu0
  %835 = vdwg.mxu0
  %v836 = vadd.f32 %v751, %v790
  %v837 = vadd.f32 %v752, %v792
  %v838 = vxor.u32 %v836, 2147483648
  %v839 = vxor.u32 %v837, 2147483648
  %v840 = vmul.f32 %v838, 1.442695
  %v841 = vpow.pop %v840
  %v842 = vmul.f32 %v839, 1.442695
  %v843 = vpow.pop %v842
  %v844 = vadd.f32 %v841, 1.0
  %v845 = vadd.f32 %v843, 1.0
  %v846 = vrcp.pop %v844
  %v847 = vmul.f32 1.0, %v846
  %v848 = vrcp.pop %v845
  %v849 = vmul.f32 1.0, %v848
  %v850 = vmul.f32 %v847, %v831
  %v851 = vadd.f32 %v753, %v850
  %v852 = vtanh.pop %v851
  %v853 = vsub.f32 %v747, %v852
  %v854 = vmul.f32 %v849, %v853
  %v855 = vadd.f32 %v852, %v854
  %s856 = smul.u32 4, 3
  %s857 = smul.addr %s856, 8
  %s858 = scalar_lea.vmem [#allocation2], %s857
  %v859 = vld [vmem:[%s858] sm:$0xff]
  %v860 = vld [vmem:[%s858 + $0x8] sm:$0xff]
  %v861 = vld [vmem:[%s858 + $0x10] sm:$0xff]
  %v862 = vpack.c.bf16 %v855, %v855
  %863 = vmatprep.subr.bf16.mxu0 %v384
  %864 = vmatpush1.bf16.msra.mxu0 %v383
  %865 = vmatprep.subr.bf16.mxu0 %v387
  %866 = vmatpush1.bf16.msra.mxu0 %v386
  %867 = vmatprep.subr.bf16.mxu0 %v390
  %868 = vmatpush1.bf16.msra.mxu0 %v389
  %869 = vmatprep.subr.bf16.mxu0 %v393
  %870 = vmatpush1.bf16.msra.mxu0 %v392
  %871 = vmatprep.subr.bf16.mxu0 %v396
  %872 = vmatpush1.bf16.msra.mxu0 %v395
  %873 = vmatprep.subr.bf16.mxu0 %v399
  %874 = vmatpush1.bf16.msra.mxu0 %v398
  %875 = vmatprep.subr.bf16.mxu0 %v402
  %876 = vmatpush1.bf16.msra.mxu0 %v401
  %877 = vmatprep.subr.bf16.mxu0 %v405
  %878 = vmatpush1.bf16.msra.mxu0 %v404
  %879 = vmatprep.subr.bf16.mxu0 0
  %880 = vmatpush1.bf16.msra.mxu0 0
  %881 = vmatprep.subr.bf16.mxu0 0
  %882 = vmatpush1.bf16.msra.mxu0 0
  %883 = vmatprep.subr.bf16.mxu0 0
  %884 = vmatpush1.bf16.msra.mxu0 0
  %885 = vmatprep.subr.bf16.mxu0 0
  %886 = vmatpush1.bf16.msra.mxu0 0
  %887 = vmatprep.subr.bf16.mxu0 0
  %888 = vmatpush1.bf16.msra.mxu0 0
  %889 = vmatprep.subr.bf16.mxu0 0
  %890 = vmatpush1.bf16.msra.mxu0 0
  %891 = vmatprep.subr.bf16.mxu0 0
  %892 = vmatpush1.bf16.msra.mxu0 0
  %893 = vmatprep.subr.bf16.mxu0 0
  %894 = vmatpush1.bf16.msra.mxu0 0
  %895 = vmatprep.mubr.bf16.mxu0 0
  %896 = vmatmul.mubr.bf16.gmra.mrb[0].mxu0 %v862
  %v897 = vpop.f32.mrb[0].mxu0
  %v898 = vadd.f32 %v283, %v897
  %v899 = vpop.f32.mrb[0].mxu0
  %v900 = vadd.f32 %v287, %v899
  %v901 = vpop.f32.mrb[0].mxu0
  %v902 = vpop.f32.mrb[0].mxu0
  %903 = vdwg.mxu0
  %904 = vmatprep.subr.bf16.mxu0 0
  %905 = vmatpush1.bf16.msra.mxu0 %v385
  %906 = vmatprep.subr.bf16.mxu0 0
  %907 = vmatpush1.bf16.msra.mxu0 %v388
  %908 = vmatprep.subr.bf16.mxu0 0
  %909 = vmatpush1.bf16.msra.mxu0 %v391
  %910 = vmatprep.subr.bf16.mxu0 0
  %911 = vmatpush1.bf16.msra.mxu0 %v394
  %912 = vmatprep.subr.bf16.mxu0 0
  %913 = vmatpush1.bf16.msra.mxu0 %v397
  %914 = vmatprep.subr.bf16.mxu0 0
  %915 = vmatpush1.bf16.msra.mxu0 %v400
  %916 = vmatprep.subr.bf16.mxu0 0
  %917 = vmatpush1.bf16.msra.mxu0 %v403
  %918 = vmatprep.subr.bf16.mxu0 0
  %919 = vmatpush1.bf16.msra.mxu0 %v406
  %920 = vmatprep.subr.bf16.mxu0 0
  %921 = vmatpush1.bf16.msra.mxu0 0
  %922 = vmatprep.subr.bf16.mxu0 0
  %923 = vmatpush1.bf16.msra.mxu0 0
  %924 = vmatprep.subr.bf16.mxu0 0
  %925 = vmatpush1.bf16.msra.mxu0 0
  %926 = vmatprep.subr.bf16.mxu0 0
  %927 = vmatpush1.bf16.msra.mxu0 0
  %928 = vmatprep.subr.bf16.mxu0 0
  %929 = vmatpush1.bf16.msra.mxu0 0
  %930 = vmatprep.subr.bf16.mxu0 0
  %931 = vmatpush1.bf16.msra.mxu0 0
  %932 = vmatprep.subr.bf16.mxu0 0
  %933 = vmatpush1.bf16.msra.mxu0 0
  %934 = vmatprep.subr.bf16.mxu0 0
  %935 = vmatpush1.bf16.msra.mxu0 0
  %936 = vmatprep.mubr.bf16.mxu0 0
  %937 = vmatmul.mubr.bf16.gmra.mrb[0].mxu0 %v862
  %v938 = vpop.f32.mrb[0].mxu0
  %v939 = vadd.f32 %v291, %v938
  %v940 = vpop.f32.mrb[0].mxu0
  %v941 = vpop.f32.mrb[0].mxu0
  %v942 = vpop.f32.mrb[0].mxu0
  %943 = vdwg.mxu0
  %v944 = vadd.f32 %v859, %v898
  %v945 = vadd.f32 %v860, %v900
  %v946 = vxor.u32 %v944, 2147483648
  %v947 = vxor.u32 %v945, 2147483648
  %v948 = vmul.f32 %v946, 1.442695
  %v949 = vpow.pop %v948
  %v950 = vmul.f32 %v947, 1.442695
  %v951 = vpow.pop %v950
  %v952 = vadd.f32 %v949, 1.0
  %v953 = vadd.f32 %v951, 1.0
  %v954 = vrcp.pop %v952
  %v955 = vmul.f32 1.0, %v954
  %v956 = vrcp.pop %v953
  %v957 = vmul.f32 1.0, %v956
  %v958 = vmul.f32 %v955, %v939
  %v959 = vadd.f32 %v861, %v958
  %v960 = vtanh.pop %v959
  %v961 = vsub.f32 %v855, %v960
  %v962 = vmul.f32 %v957, %v961
  %v963 = vadd.f32 %v960, %v962
  %s964 = smul.u32 5, 3
  %s965 = smul.addr %s964, 8
  %s966 = scalar_lea.vmem [#allocation2], %s965
  %v967 = vld [vmem:[%s966] sm:$0xff]
  %v968 = vld [vmem:[%s966 + $0x8] sm:$0xff]
  %v969 = vld [vmem:[%s966 + $0x10] sm:$0xff]
  %v970 = vpack.c.bf16 %v963, %v963
  %971 = vmatprep.subr.bf16.mxu0 %v384
  %972 = vmatpush1.bf16.msra.mxu0 %v383
  %973 = vmatprep.subr.bf16.mxu0 %v387
  %974 = vmatpush1.bf16.msra.mxu0 %v386
  %975 = vmatprep.subr.bf16.mxu0 %v390
  %976 = vmatpush1.bf16.msra.mxu0 %v389
  %977 = vmatprep.subr.bf16.mxu0 %v393
  %978 = vmatpush1.bf16.msra.mxu0 %v392
  %979 = vmatprep.subr.bf16.mxu0 %v396
  %980 = vmatpush1.bf16.msra.mxu0 %v395
  %981 = vmatprep.subr.bf16.mxu0 %v399
  %982 = vmatpush1.bf16.msra.mxu0 %v398
  %983 = vmatprep.subr.bf16.mxu0 %v402
  %984 = vmatpush1.bf16.msra.mxu0 %v401
  %985 = vmatprep.subr.bf16.mxu0 %v405
  %986 = vmatpush1.bf16.msra.mxu0 %v404
  %987 = vmatprep.subr.bf16.mxu0 0
  %988 = vmatpush1.bf16.msra.mxu0 0
  %989 = vmatprep.subr.bf16.mxu0 0
  %990 = vmatpush1.bf16.msra.mxu0 0
  %991 = vmatprep.subr.bf16.mxu0 0
  %992 = vmatpush1.bf16.msra.mxu0 0
  %993 = vmatprep.subr.bf16.mxu0 0
  %994 = vmatpush1.bf16.msra.mxu0 0
  %995 = vmatprep.subr.bf16.mxu0 0
  %996 = vmatpush1.bf16.msra.mxu0 0
  %997 = vmatprep.subr.bf16.mxu0 0
  %998 = vmatpush1.bf16.msra.mxu0 0
  %999 = vmatprep.subr.bf16.mxu0 0
  %1000 = vmatpush1.bf16.msra.mxu0 0
  %1001 = vmatprep.subr.bf16.mxu0 0
  %1002 = vmatpush1.bf16.msra.mxu0 0
  %1003 = vmatprep.mubr.bf16.mxu0 0
  %1004 = vmatmul.mubr.bf16.gmra.mrb[0].mxu0 %v970
  %v1005 = vpop.f32.mrb[0].mxu0
  %v1006 = vadd.f32 %v283, %v1005
  %v1007 = vpop.f32.mrb[0].mxu0
  %v1008 = vadd.f32 %v287, %v1007
  %v1009 = vpop.f32.mrb[0].mxu0
  %v1010 = vpop.f32.mrb[0].mxu0
  %1011 = vdwg.mxu0
  %1012 = vmatprep.subr.bf16.mxu0 0
  %1013 = vmatpush1.bf16.msra.mxu0 %v385
  %1014 = vmatprep.subr.bf16.mxu0 0
  %1015 = vmatpush1.bf16.msra.mxu0 %v388
  %1016 = vmatprep.subr.bf16.mxu0 0
  %1017 = vmatpush1.bf16.msra.mxu0 %v391
  %1018 = vmatprep.subr.bf16.mxu0 0
  %1019 = vmatpush1.bf16.msra.mxu0 %v394
  %1020 = vmatprep.subr.bf16.mxu0 0
  %1021 = vmatpush1.bf16.msra.mxu0 %v397
  %1022 = vmatprep.subr.bf16.mxu0 0
  %1023 = vmatpush1.bf16.msra.mxu0 %v400
  %1024 = vmatprep.subr.bf16.mxu0 0
  %1025 = vmatpush1.bf16.msra.mxu0 %v403
  %1026 = vmatprep.subr.bf16.mxu0 0
  %1027 = vmatpush1.bf16.msra.mxu0 %v406
  %1028 = vmatprep.subr.bf16.mxu0 0
  %1029 = vmatpush1.bf16.msra.mxu0 0
  %1030 = vmatprep.subr.bf16.mxu0 0
  %1031 = vmatpush1.bf16.msra.mxu0 0
  %1032 = vmatprep.subr.bf16.mxu0 0
  %1033 = vmatpush1.bf16.msra.mxu0 0
  %1034 = vmatprep.subr.bf16.mxu0 0
  %1035 = vmatpush1.bf16.msra.mxu0 0
  %1036 = vmatprep.subr.bf16.mxu0 0
  %1037 = vmatpush1.bf16.msra.mxu0 0
  %1038 = vmatprep.subr.bf16.mxu0 0
  %1039 = vmatpush1.bf16.msra.mxu0 0
  %1040 = vmatprep.subr.bf16.mxu0 0
  %1041 = vmatpush1.bf16.msra.mxu0 0
  %1042 = vmatprep.subr.bf16.mxu0 0
  %1043 = vmatpush1.bf16.msra.mxu0 0
  %1044 = vmatprep.mubr.bf16.mxu0 0
  %1045 = vmatmul.mubr.bf16.gmra.mrb[0].mxu0 %v970
  %v1046 = vpop.f32.mrb[0].mxu0
  %v1047 = vadd.f32 %v291, %v1046
  %v1048 = vpop.f32.mrb[0].mxu0
  %v1049 = vpop.f32.mrb[0].mxu0
  %v1050 = vpop.f32.mrb[0].mxu0
  %1051 = vdwg.mxu0
  %v1052 = vadd.f32 %v967, %v1006
  %v1053 = vadd.f32 %v968, %v1008
  %v1054 = vxor.u32 %v1052, 2147483648
  %v1055 = vxor.u32 %v1053, 2147483648
  %v1056 = vmul.f32 %v1054, 1.442695
  %v1057 = vpow.pop %v1056
  %v1058 = vmul.f32 %v1055, 1.442695
  %v1059 = vpow.pop %v1058
  %v1060 = vadd.f32 %v1057, 1.0
  %v1061 = vadd.f32 %v1059, 1.0
  %v1062 = vrcp.pop %v1060
  %v1063 = vmul.f32 1.0, %v1062
  %v1064 = vrcp.pop %v1061
  %v1065 = vmul.f32 1.0, %v1064
  %v1066 = vmul.f32 %v1063, %v1047
  %v1067 = vadd.f32 %v969, %v1066
  %v1068 = vtanh.pop %v1067
  %v1069 = vsub.f32 %v963, %v1068
  %v1070 = vmul.f32 %v1065, %v1069
  %v1071 = vadd.f32 %v1068, %v1070
  %s1072 = smul.u32 6, 3
  %s1073 = smul.addr %s1072, 8
  %s1074 = scalar_lea.vmem [#allocation2], %s1073
  %v1075 = vld [vmem:[%s1074] sm:$0xff]
  %v1076 = vld [vmem:[%s1074 + $0x8] sm:$0xff]
  %v1077 = vld [vmem:[%s1074 + $0x10] sm:$0xff]
  %v1078 = vpack.c.bf16 %v1071, %v1071
  %1079 = vmatprep.subr.bf16.mxu0 %v384
  %1080 = vmatpush1.bf16.msra.mxu0 %v383
  %1081 = vmatprep.subr.bf16.mxu0 %v387
  %1082 = vmatpush1.bf16.msra.mxu0 %v386
  %1083 = vmatprep.subr.bf16.mxu0 %v390
  %1084 = vmatpush1.bf16.msra.mxu0 %v389
  %1085 = vmatprep.subr.bf16.mxu0 %v393
  %1086 = vmatpush1.bf16.msra.mxu0 %v392
  %1087 = vmatprep.subr.bf16.mxu0 %v396
  %1088 = vmatpush1.bf16.msra.mxu0 %v395
  %1089 = vmatprep.subr.bf16.mxu0 %v399
  %1090 = vmatpush1.bf16.msra.mxu0 %v398
  %1091 = vmatprep.subr.bf16.mxu0 %v402
  %1092 = vmatpush1.bf16.msra.mxu0 %v401
  %1093 = vmatprep.subr.bf16.mxu0 %v405
  %1094 = vmatpush1.bf16.msra.mxu0 %v404
  %1095 = vmatprep.subr.bf16.mxu0 0
  %1096 = vmatpush1.bf16.msra.mxu0 0
  %1097 = vmatprep.subr.bf16.mxu0 0
  %1098 = vmatpush1.bf16.msra.mxu0 0
  %1099 = vmatprep.subr.bf16.mxu0 0
  %1100 = vmatpush1.bf16.msra.mxu0 0
  %1101 = vmatprep.subr.bf16.mxu0 0
  %1102 = vmatpush1.bf16.msra.mxu0 0
  %1103 = vmatprep.subr.bf16.mxu0 0
  %1104 = vmatpush1.bf16.msra.mxu0 0
  %1105 = vmatprep.subr.bf16.mxu0 0
  %1106 = vmatpush1.bf16.msra.mxu0 0
  %1107 = vmatprep.subr.bf16.mxu0 0
  %1108 = vmatpush1.bf16.msra.mxu0 0
  %1109 = vmatprep.subr.bf16.mxu0 0
  %1110 = vmatpush1.bf16.msra.mxu0 0
  %1111 = vmatprep.mubr.bf16.mxu0 0
  %1112 = vmatmul.mubr.bf16.gmra.mrb[0].mxu0 %v1078
  %v1113 = vpop.f32.mrb[0].mxu0
  %v1114 = vadd.f32 %v283, %v1113
  %v1115 = vpop.f32.mrb[0].mxu0
  %v1116 = vadd.f32 %v287, %v1115
  %v1117 = vpop.f32.mrb[0].mxu0
  %v1118 = vpop.f32.mrb[0].mxu0
  %1119 = vdwg.mxu0
  %1120 = vmatprep.subr.bf16.mxu0 0
  %1121 = vmatpush1.bf16.msra.mxu0 %v385
  %1122 = vmatprep.subr.bf16.mxu0 0
  %1123 = vmatpush1.bf16.msra.mxu0 %v388
  %1124 = vmatprep.subr.bf16.mxu0 0
  %1125 = vmatpush1.bf16.msra.mxu0 %v391
  %1126 = vmatprep.subr.bf16.mxu0 0
  %1127 = vmatpush1.bf16.msra.mxu0 %v394
  %1128 = vmatprep.subr.bf16.mxu0 0
  %1129 = vmatpush1.bf16.msra.mxu0 %v397
  %1130 = vmatprep.subr.bf16.mxu0 0
  %1131 = vmatpush1.bf16.msra.mxu0 %v400
  %1132 = vmatprep.subr.bf16.mxu0 0
  %1133 = vmatpush1.bf16.msra.mxu0 %v403
  %1134 = vmatprep.subr.bf16.mxu0 0
  %1135 = vmatpush1.bf16.msra.mxu0 %v406
  %1136 = vmatprep.subr.bf16.mxu0 0
  %1137 = vmatpush1.bf16.msra.mxu0 0
  %1138 = vmatprep.subr.bf16.mxu0 0
  %1139 = vmatpush1.bf16.msra.mxu0 0
  %1140 = vmatprep.subr.bf16.mxu0 0
  %1141 = vmatpush1.bf16.msra.mxu0 0
  %1142 = vmatprep.subr.bf16.mxu0 0
  %1143 = vmatpush1.bf16.msra.mxu0 0
  %1144 = vmatprep.subr.bf16.mxu0 0
  %1145 = vmatpush1.bf16.msra.mxu0 0
  %1146 = vmatprep.subr.bf16.mxu0 0
  %1147 = vmatpush1.bf16.msra.mxu0 0
  %1148 = vmatprep.subr.bf16.mxu0 0
  %1149 = vmatpush1.bf16.msra.mxu0 0
  %1150 = vmatprep.subr.bf16.mxu0 0
  %1151 = vmatpush1.bf16.msra.mxu0 0
  %1152 = vmatprep.mubr.bf16.mxu0 0
  %1153 = vmatmul.mubr.bf16.gmra.mrb[0].mxu0 %v1078
  %v1154 = vpop.f32.mrb[0].mxu0
  %v1155 = vadd.f32 %v291, %v1154
  %v1156 = vpop.f32.mrb[0].mxu0
  %v1157 = vpop.f32.mrb[0].mxu0
  %v1158 = vpop.f32.mrb[0].mxu0
  %1159 = vdwg.mxu0
  %v1160 = vadd.f32 %v1075, %v1114
  %v1161 = vadd.f32 %v1076, %v1116
  %v1162 = vxor.u32 %v1160, 2147483648
  %v1163 = vxor.u32 %v1161, 2147483648
  %v1164 = vmul.f32 %v1162, 1.442695
  %v1165 = vpow.pop %v1164
  %v1166 = vmul.f32 %v1163, 1.442695
  %v1167 = vpow.pop %v1166
  %v1168 = vadd.f32 %v1165, 1.0
  %v1169 = vadd.f32 %v1167, 1.0
  %v1170 = vrcp.pop %v1168
  %v1171 = vmul.f32 1.0, %v1170
  %v1172 = vrcp.pop %v1169
  %v1173 = vmul.f32 1.0, %v1172
  %v1174 = vmul.f32 %v1171, %v1155
  %v1175 = vadd.f32 %v1077, %v1174
  %v1176 = vtanh.pop %v1175
  %v1177 = vsub.f32 %v1071, %v1176
  %v1178 = vmul.f32 %v1173, %v1177
  %v1179 = vadd.f32 %v1176, %v1178
  %s1180 = smul.u32 7, 3
  %s1181 = smul.addr %s1180, 8
  %s1182 = scalar_lea.vmem [#allocation2], %s1181
  %v1183 = vld [vmem:[%s1182] sm:$0xff]
  %v1184 = vld [vmem:[%s1182 + $0x8] sm:$0xff]
  %v1185 = vld [vmem:[%s1182 + $0x10] sm:$0xff]
  %v1186 = vpack.c.bf16 %v1179, %v1179
  %1187 = vmatprep.subr.bf16.mxu0 %v384
  %1188 = vmatpush1.bf16.msra.mxu0 %v383
  %1189 = vmatprep.subr.bf16.mxu0 %v387
  %1190 = vmatpush1.bf16.msra.mxu0 %v386
  %1191 = vmatprep.subr.bf16.mxu0 %v390
  %1192 = vmatpush1.bf16.msra.mxu0 %v389
  %1193 = vmatprep.subr.bf16.mxu0 %v393
  %1194 = vmatpush1.bf16.msra.mxu0 %v392
  %1195 = vmatprep.subr.bf16.mxu0 %v396
  %1196 = vmatpush1.bf16.msra.mxu0 %v395
  %1197 = vmatprep.subr.bf16.mxu0 %v399
  %1198 = vmatpush1.bf16.msra.mxu0 %v398
  %1199 = vmatprep.subr.bf16.mxu0 %v402
  %1200 = vmatpush1.bf16.msra.mxu0 %v401
  %1201 = vmatprep.subr.bf16.mxu0 %v405
  %1202 = vmatpush1.bf16.msra.mxu0 %v404
  %1203 = vmatprep.subr.bf16.mxu0 0
  %1204 = vmatpush1.bf16.msra.mxu0 0
  %1205 = vmatprep.subr.bf16.mxu0 0
  %1206 = vmatpush1.bf16.msra.mxu0 0
  %1207 = vmatprep.subr.bf16.mxu0 0
  %1208 = vmatpush1.bf16.msra.mxu0 0
  %1209 = vmatprep.subr.bf16.mxu0 0
  %1210 = vmatpush1.bf16.msra.mxu0 0
  %1211 = vmatprep.subr.bf16.mxu0 0
  %1212 = vmatpush1.bf16.msra.mxu0 0
  %1213 = vmatprep.subr.bf16.mxu0 0
  %1214 = vmatpush1.bf16.msra.mxu0 0
  %1215 = vmatprep.subr.bf16.mxu0 0
  %1216 = vmatpush1.bf16.msra.mxu0 0
  %1217 = vmatprep.subr.bf16.mxu0 0
  %1218 = vmatpush1.bf16.msra.mxu0 0
  %1219 = vmatprep.mubr.bf16.mxu0 0
  %1220 = vmatmul.mubr.bf16.gmra.mrb[0].mxu0 %v1186
  %v1221 = vpop.f32.mrb[0].mxu0
  %v1222 = vadd.f32 %v283, %v1221
  %v1223 = vpop.f32.mrb[0].mxu0
  %v1224 = vadd.f32 %v287, %v1223
  %v1225 = vpop.f32.mrb[0].mxu0
  %v1226 = vpop.f32.mrb[0].mxu0
  %1227 = vdwg.mxu0
  %1228 = vmatprep.subr.bf16.mxu0 0
  %1229 = vmatpush1.bf16.msra.mxu0 %v385
  %1230 = vmatprep.subr.bf16.mxu0 0
  %1231 = vmatpush1.bf16.msra.mxu0 %v388
  %1232 = vmatprep.subr.bf16.mxu0 0
  %1233 = vmatpush1.bf16.msra.mxu0 %v391
  %1234 = vmatprep.subr.bf16.mxu0 0
  %1235 = vmatpush1.bf16.msra.mxu0 %v394
  %1236 = vmatprep.subr.bf16.mxu0 0
  %1237 = vmatpush1.bf16.msra.mxu0 %v397
  %1238 = vmatprep.subr.bf16.mxu0 0
  %1239 = vmatpush1.bf16.msra.mxu0 %v400
  %1240 = vmatprep.subr.bf16.mxu0 0
  %1241 = vmatpush1.bf16.msra.mxu0 %v403
  %1242 = vmatprep.subr.bf16.mxu0 0
  %1243 = vmatpush1.bf16.msra.mxu0 %v406
  %1244 = vmatprep.subr.bf16.mxu0 0
  %1245 = vmatpush1.bf16.msra.mxu0 0
  %1246 = vmatprep.subr.bf16.mxu0 0
  %1247 = vmatpush1.bf16.msra.mxu0 0
  %1248 = vmatprep.subr.bf16.mxu0 0
  %1249 = vmatpush1.bf16.msra.mxu0 0
  %1250 = vmatprep.subr.bf16.mxu0 0
  %1251 = vmatpush1.bf16.msra.mxu0 0
  %1252 = vmatprep.subr.bf16.mxu0 0
  %1253 = vmatpush1.bf16.msra.mxu0 0
  %1254 = vmatprep.subr.bf16.mxu0 0
  %1255 = vmatpush1.bf16.msra.mxu0 0
  %1256 = vmatprep.subr.bf16.mxu0 0
  %1257 = vmatpush1.bf16.msra.mxu0 0
  %1258 = vmatprep.subr.bf16.mxu0 0
  %1259 = vmatpush1.bf16.msra.mxu0 0
  %1260 = vmatprep.mubr.bf16.mxu0 0
  %1261 = vmatmul.mubr.bf16.gmra.mrb[0].mxu0 %v1186
  %v1262 = vpop.f32.mrb[0].mxu0
  %v1263 = vadd.f32 %v291, %v1262
  %v1264 = vpop.f32.mrb[0].mxu0
  %v1265 = vpop.f32.mrb[0].mxu0
  %v1266 = vpop.f32.mrb[0].mxu0
  %1267 = vdwg.mxu0
  %v1268 = vadd.f32 %v1183, %v1222
  %v1269 = vadd.f32 %v1184, %v1224
  %v1270 = vxor.u32 %v1268, 2147483648
  %v1271 = vxor.u32 %v1269, 2147483648
  %v1272 = vmul.f32 %v1270, 1.442695
  %v1273 = vpow.pop %v1272
  %v1274 = vmul.f32 %v1271, 1.442695
  %v1275 = vpow.pop %v1274
  %v1276 = vadd.f32 %v1273, 1.0
  %v1277 = vadd.f32 %v1275, 1.0
  %v1278 = vrcp.pop %v1276
  %v1279 = vmul.f32 1.0, %v1278
  %v1280 = vrcp.pop %v1277
  %v1281 = vmul.f32 1.0, %v1280
  %v1282 = vmul.f32 %v1279, %v1263
  %v1283 = vadd.f32 %v1185, %v1282
  %v1284 = vtanh.pop %v1283
  %v1285 = vsub.f32 %v1179, %v1284
  %v1286 = vmul.f32 %v1281, %v1285
  %v1287 = vadd.f32 %v1284, %v1286
  %1288 = vst [vmem:[#allocation3] sm:$0xff] %v1287
  // Predicated region
  $region22: #{gru_forward.1} parent=0 // pred_check
    %p1289 = pneg %p241
  $region23: #{gru_forward.1} parent=0 // pred_check_branch
    %1291 = sbr.rel (%p1289) target = $region25
  $region24: #{gru_forward.1} parent=0 // pred_region
    %1292 = vst [vmem:[%s4] sm:$0xff] %v1287
  $region25: #{gru_forward.1} parent=0 // pred_fallthru
    _
  // Predicated region
  $region26: #{gru_forward.1} parent=0 // pred_check
    _
  $region27: #{gru_forward.1} parent=0 // pred_check_branch
    %1294 = sbr.rel (0) target = $region29
  $region28: #{gru_forward.1} parent=0 // pred_region
    _
  $region29: #{gru_forward.1} parent=0 // pred_fallthru
    _
  // Predicated region
  $region30: #{gru_forward.1} parent=0 // pred_check
    _
  $region31: #{gru_forward.1} parent=0 // pred_check_branch
    %1296 = sbr.rel (0) target = $region33
  $region32: #{gru_forward.1} parent=0 // pred_region
    _
  $region33: #{gru_forward.1} parent=0 // pred_fallthru
    _

</llo_original>
